<compile_context>
chip_gen: v6e
topology: v6e:2x2x1
jax: 0.10.0
libtpu: 0.0.40
codegen_flags: <defaults>
</compile_context>

<pallas_src>
import numpy as np

import jax
import jax.numpy as jnp
from jax.experimental import pallas as pl
from jax.experimental.pallas import tpu as pltpu


# (dy offset into the 1-row-padded conv output, ConvTranspose tap ky) for each
# output phase r = oy % 2 (same table along x).  Matches
# ConvTranspose2d(kernel_size=4, stride=2, padding=1).
_DECONV_TAPS = {0: ((0, 3), (1, 1)), 1: ((1, 2), (2, 0))}


# ---------------------------------------------------------------------------
# Host-side banded-weight builders (init time, numpy)
# ---------------------------------------------------------------------------
def _build_banded_conv_weight(conv_w_t, width):
    """torch Conv2d weight (Cmid, Cin, 3, 3) -> (3, W*Cin, W*Cmid) banded.

    h_row[y, x*Cmid + co] = sum_ky xrows[y+ky, :] @ big[ky]
    where xrows is the row-only zero-padded (H+2, W*Cin) input slab.  The
    left/right x-padding is folded into the band structure (out-of-range
    columns simply get no weight).
    """
    w = np.asarray(jax.device_get(conv_w_t), np.float32)   # (Cmid, Cin, 3, 3)
    cmid, cin = w.shape[0], w.shape[1]
    big = np.zeros((3, width * cin, width * cmid), np.float32)
    for ky in range(3):
        for x in range(width):
            for kx in range(3):
                u = x + kx - 1                               # input column
                if 0 <= u < width:
                    big[ky, u * cin:(u + 1) * cin,
                        x * cmid:(x + 1) * cmid] = w[:, :, ky, kx].T
    return jnp.asarray(big)


def _build_banded_deconv_weight(deconv_w_t, width):
    """torch ConvTranspose2d weight (Cmid, Cout, 4, 4) ->
    (3, W*Cmid, W*4*Cout) banded, phase-packed over (ry, rx) = (oy%2, ox%2).

    out[2a+ry, 2b+rx, co] = sum_dy hrows[a+dy, :] @ big[dy]  at lane
    b*4*Cout + (2*ry+rx)*Cout + co, with hrows the row-only zero-padded
    (H+2, W*Cmid) ConvRelu output slab.
    """
    w = np.asarray(jax.device_get(deconv_w_t), np.float32)  # (Cmid, Cout, 4, 4)
    cmid, cout = w.shape[0], w.shape[1]
    co4 = 4 * cout
    # phase-packed 3x3 tap weight wp[dy, dx, ci, (2*ry+rx)*Cout + co]
    wp = np.zeros((3, 3, cmid, co4), np.float32)
    for ry in range(2):
        for rx in range(2):
            q = 2 * ry + rx
            for dy, ky in _DECONV_TAPS[ry]:
                for dx, kx in _DECONV_TAPS[rx]:
                    wp[dy, dx, :, q * cout:(q + 1) * cout] = w[:, :, ky, kx]
    big = np.zeros((3, width * cmid, width * co4), np.float32)
    for dy in range(3):
        for b in range(width):
            for dx in range(3):
                u = b + dx - 1                               # h column
                if 0 <= u < width:
                    big[dy, u * cmid:(u + 1) * cmid,
                        b * co4:(b + 1) * co4] = wp[dy, dx]
    return jnp.asarray(big)


# ---------------------------------------------------------------------------
# Fused kernel
# ---------------------------------------------------------------------------
def _decoder_block_fused_kernel(x_ref, w1_ref, b1_ref, w2_ref, b2_ref,
                                o_ref, xrows_ref, hrows_ref):
    # x_ref    : (nb, H, W*Cin)          bf16  (NHWC rows, channels innermost)
    # w1_ref   : (3, W*Cin, W*Cmid)      bf16  banded conv weight
    # b1_ref   : (1, W*Cmid)             f32   width-tiled conv bias
    # w2_ref   : (3, W*Cmid, W*4*Cout)   bf16  banded phase-packed deconv weight
    # b2_ref   : (1, W*4*Cout)           f32   width+phase-tiled deconv bias
    # o_ref    : (nb, H, W*4*Cout)       f32   lane-dense phase-packed output
    # xrows_ref: (H+2, W*Cin)   bf16 scratch (zero halo rows only)
    # hrows_ref: (H+2, W*Cmid)  bf16 scratch (fused intermediate, stays in VMEM)
    nb, H = x_ref.shape[0], x_ref.shape[1]
    wcin = x_ref.shape[2]
    wcmid = hrows_ref.shape[1]

    # Halo-only zeroing (interior rows are fully overwritten below).  Re-done
    # every grid step so it stays correct when the batch axis is sharded
    # across TensorCores; the cost is 4 short row stores.
    zx = jnp.zeros((1, wcin), xrows_ref.dtype)
    zh = jnp.zeros((1, wcmid), hrows_ref.dtype)
    xrows_ref[0:1, :] = zx
    xrows_ref[H + 1:H + 2, :] = zx
    hrows_ref[0:1, :] = zh
    hrows_ref[H + 1:H + 2, :] = zh

    for i in range(nb):          # static unroll: images folded into this step
        # Full-width aligned store of the (already bf16) input rows.
        xrows_ref[1:H + 1, :] = x_ref[i]

        # ---- stage 1: ConvRelu = 3x3 conv (pad=1) + ReLU.
        # 3 banded matmuls (K = W*Cin, N = W*Cmid); taps are pure
        # sublane-offset slices, f32 accumulation on the MXU.
        acc = jnp.dot(xrows_ref[0:H, :], w1_ref[0],
                      preferred_element_type=jnp.float32)
        for ky in (1, 2):
            acc = acc + jnp.dot(xrows_ref[ky:ky + H, :], w1_ref[ky],
                                preferred_element_type=jnp.float32)
        h = jnp.maximum(acc + b1_ref[0], 0.0)
        # Fused intermediate: full-width (128-lane) store, stays in VMEM.
        hrows_ref[1:H + 1, :] = h.astype(hrows_ref.dtype)

        # ---- stage 2: ConvTranspose2d(k=4, s=2, p=1) + ReLU, phase-packed.
        # All four output phases accumulate together through the banded
        # fat-N weight: 3 matmuls + ONE lane-dense (W*4*Cout-wide) store.
        acc2 = jnp.dot(hrows_ref[0:H, :], w2_ref[0],
                       preferred_element_type=jnp.float32)
        for dy in (1, 2):
            acc2 = acc2 + jnp.dot(hrows_ref[dy:dy + H, :], w2_ref[dy],
                                  preferred_element_type=jnp.float32)
        o_ref[i] = jnp.maximum(acc2 + b2_ref[0], 0.0)


# ---------------------------------------------------------------------------
# Wrapper
# ---------------------------------------------------------------------------
def decoder_block_v2_forward(x_nchw, params, *, images_per_step=1):
    """DecoderBlockV2(is_deconv=True).forward.  Input/output are NCHW (torch).

    images_per_step: images folded into one grid step (M-folding).  Default 1
    keeps >=2 parallel grid iterations for the 2-TC v7x; set to N on
    single-TensorCore v5e/v6e to remove per-step grid overhead.
    """
    N, cin, H, W = x_nchw.shape
    w1 = params["conv_w_banded"]          # (3, W*Cin,  W*Cmid)   bf16
    w2 = params["deconv_w_banded"]        # (3, W*Cmid, W*4*Cout) bf16
    wcmid = w1.shape[-1]
    wco4 = w2.shape[-1]
    co = wco4 // (4 * W)
    assert w1.shape[1] == W * cin, "banded weights built for a different width"
    b1 = params["conv_b_row"].reshape(1, wcmid).astype(jnp.float32)
    b2 = params["deconv_b_row"].reshape(1, wco4).astype(jnp.float32)

    nb = images_per_step
    assert N % nb == 0

    # NCHW -> bf16 (halves the input DMA) row slabs (N, H, W*Cin).
    x = jnp.transpose(x_nchw, (0, 2, 3, 1)).astype(jnp.bfloat16)
    x = x.reshape(N, H, W * cin)

    y = pl.pallas_call(
        _decoder_block_fused_kernel,
        out_shape=jax.ShapeDtypeStruct((N, H, wco4), jnp.float32),
        grid=(N // nb,),
        in_specs=[
            pl.BlockSpec((nb, H, W * cin), lambda n: (n, 0, 0)),
            pl.BlockSpec((3, W * cin, wcmid), lambda n: (0, 0, 0)),
            pl.BlockSpec((1, wcmid), lambda n: (0, 0)),
            pl.BlockSpec((3, wcmid, wco4), lambda n: (0, 0, 0)),
            pl.BlockSpec((1, wco4), lambda n: (0, 0)),
        ],
        out_specs=pl.BlockSpec((nb, H, wco4), lambda n: (n, 0, 0)),
        scratch_shapes=[
            pltpu.VMEM((H + 2, W * cin), jnp.bfloat16),
            pltpu.VMEM((H + 2, wcmid), jnp.bfloat16),
        ],
        compiler_params=pltpu.CompilerParams(
            dimension_semantics=("parallel",)),
    )(x, w1, b1, w2, b2)

    # (N, H, W*4*Co): [n, a, b*4Co + (2ry+rx)*Co + co] -> NCHW [n, co, 2a+ry, 2b+rx].
    # Phase interleave + NHWC->NCHW fold into one fused XLA transpose.  If the
    # consumer is NHWC/phase-packed, skip this and keep y as-is.
    y = y.reshape(N, H, W, 2, 2, co)
    y = jnp.transpose(y, (0, 5, 1, 3, 2, 4)).reshape(N, co, 2 * H, 2 * W)
    return y


def init_decoder_block_params(key, in_channels, middle_channels, out_channels,
                              width):
    k1, k2, k3, k4 = jax.random.split(key, 4)
    # torch layouts: Conv2d (Cout, Cin, 3, 3); ConvTranspose2d (Cin, Cout, 4, 4)
    conv_w_t = 0.1 * jax.random.normal(
        k1, (middle_channels, in_channels, 3, 3), jnp.float32)
    conv_b = 0.1 * jax.random.normal(k2, (middle_channels,), jnp.float32)
    deconv_w_t = 0.1 * jax.random.normal(
        k3, (middle_channels, out_channels, 4, 4), jnp.float32)
    deconv_b = 0.1 * jax.random.normal(k4, (out_channels,), jnp.float32)
    return {
        # torch-layout f32 copies (used by the pure-JAX reference)
        "conv_w_t": conv_w_t, "conv_b": conv_b,
        "deconv_w_t": deconv_w_t, "deconv_b": deconv_b,
        # kernel-ready layouts: banded lane-dense bf16 weights, tiled f32 biases
        "conv_w_banded":
            _build_banded_conv_weight(conv_w_t, width).astype(jnp.bfloat16),
        "deconv_w_banded":
            _build_banded_deconv_weight(deconv_w_t, width).astype(jnp.bfloat16),
        "conv_b_row": jnp.tile(conv_b, width),
        "deconv_b_row": jnp.tile(deconv_b, 4 * width),
    }


# ---------------------------------------------------------------------------
# Pure-JAX reference (bf16-activation precision, mirrors the kernel numerics)
# ---------------------------------------------------------------------------
def _reference_forward(x_nchw, params):
    x = jnp.transpose(x_nchw, (0, 2, 3, 1)).astype(jnp.bfloat16)
    wc = jnp.transpose(params["conv_w_t"], (2, 3, 1, 0)).astype(jnp.bfloat16)
    h = jax.lax.conv_general_dilated(
        x, wc, window_strides=(1, 1), padding=((1, 1), (1, 1)),
        dimension_numbers=("NHWC", "HWIO", "NHWC"),
        preferred_element_type=jnp.float32)
    h = jnp.maximum(h + params["conv_b"], 0.0).astype(jnp.bfloat16)
    # conv_transpose(k=4,s=2,p=1) == dilated conv with flipped, in/out-swapped
    # kernel, lhs_dilation=2, padding=k-1-p=2.
    wt = jnp.transpose(params["deconv_w_t"], (2, 3, 0, 1)).astype(jnp.bfloat16)
    w_flip = wt[::-1, ::-1, :, :]
    y = jax.lax.conv_general_dilated(
        h, w_flip, window_strides=(1, 1), padding=((2, 2), (2, 2)),
        lhs_dilation=(2, 2), dimension_numbers=("NHWC", "HWIO", "NHWC"),
        preferred_element_type=jnp.float32)
    y = jnp.maximum(y + params["deconv_b"], 0.0)
    return jnp.transpose(y, (0, 3, 1, 2))


if __name__ == "__main__":
    N, Cin, Cmid, Cout, H, W = 2, 4, 8, 8, 16, 16
    key = jax.random.PRNGKey(0)
    kx, kp = jax.random.split(key)
    x = jax.random.normal(kx, (N, Cin, H, W), jnp.float32)   # NCHW, like torch
    params = init_decoder_block_params(kp, Cin, Cmid, Cout, width=W)

    fwd = jax.jit(decoder_block_v2_forward)
    out = jax.block_until_ready(fwd(x, params))
    assert out.shape == (N, Cout, 2 * H, 2 * W), out.shape

    ref = jax.block_until_ready(_reference_forward(x, params))
    err = float(jnp.max(jnp.abs(out - ref)))
    # Both kernel and reference use bf16 activations/weights with f32
    # accumulation, so only accumulation-order / 1-ulp bf16 rounding remains.
    assert err < 2e-2, f"mismatch vs reference: max abs err = {err}"

    print("KERNEL_OK")
</pallas_src>

<mosaic_0001>
module attributes {stable_mosaic.version = 11 : i64} {
  func.func @_decoder_block_fused_kernel(%arg0: i32, %arg1: memref<1x16x64xbf16, #tpu.memory_space<vmem>>, %arg2: memref<3x64x128xbf16, #tpu.memory_space<vmem>>, %arg3: memref<1x128xf32, #tpu.memory_space<vmem>>, %arg4: memref<3x128x512xbf16, #tpu.memory_space<vmem>>, %arg5: memref<1x512xf32, #tpu.memory_space<vmem>>, %arg6: memref<1x16x512xf32, #tpu.memory_space<vmem>>, %arg7: memref<18x64xbf16, #tpu.memory_space<vmem>>, %arg8: memref<18x128xbf16, #tpu.memory_space<vmem>>) attributes {dimension_semantics = [#tpu.dimension_semantics<parallel>], iteration_bounds = array<i64: 2>, scalar_prefetch = 0 : i64, scratch_operands = 2 : i64, tpu.core_type = #tpu.core_type<tc>, window_params = [{transform_indices = @transform_0, window_bounds = array<i64: 1, 16, 64>}, {pipeline_mode = #tpu.pipeline_mode<synchronous>, transform_indices = @transform_1, window_bounds = array<i64: 3, 64, 128>}, {pipeline_mode = #tpu.pipeline_mode<synchronous>, transform_indices = @transform_2, window_bounds = array<i64: 1, 128>}, {pipeline_mode = #tpu.pipeline_mode<synchronous>, transform_indices = @transform_3, window_bounds = array<i64: 3, 128, 512>}, {pipeline_mode = #tpu.pipeline_mode<synchronous>, transform_indices = @transform_4, window_bounds = array<i64: 1, 512>}, {transform_indices = @transform_5, window_bounds = array<i64: 1, 16, 512>}]} {
    %cst = arith.constant 0.000000e+00 : bf16
    %0 = vector.broadcast %cst : bf16 to vector<1x64xbf16>
    %cst_0 = arith.constant 0.000000e+00 : bf16
    %1 = vector.broadcast %cst_0 : bf16 to vector<1x128xbf16>
    %c0 = arith.constant 0 : index
    %c0_1 = arith.constant 0 : index
    %2 = vector.load %arg7[%c0, %c0_1] : memref<18x64xbf16, #tpu.memory_space<vmem>>, vector<1x64xbf16>
    tpu.vector_store %arg7[%c0, %c0_1], %0 {strides = array<i32>} : memref<18x64xbf16, #tpu.memory_space<vmem>>, vector<1x64xbf16>,
    %c17 = arith.constant 17 : index
    %c0_2 = arith.constant 0 : index
    %3 = vector.load %arg7[%c17, %c0_2] : memref<18x64xbf16, #tpu.memory_space<vmem>>, vector<1x64xbf16>
    tpu.vector_store %arg7[%c17, %c0_2], %0 {strides = array<i32>} : memref<18x64xbf16, #tpu.memory_space<vmem>>, vector<1x64xbf16>,
    %c0_3 = arith.constant 0 : index
    %c0_4 = arith.constant 0 : index
    %4 = vector.load %arg8[%c0_3, %c0_4] : memref<18x128xbf16, #tpu.memory_space<vmem>>, vector<1x128xbf16>
    tpu.vector_store %arg8[%c0_3, %c0_4], %1 {strides = array<i32>} : memref<18x128xbf16, #tpu.memory_space<vmem>>, vector<1x128xbf16>,
    %c17_5 = arith.constant 17 : index
    %c0_6 = arith.constant 0 : index
    %5 = vector.load %arg8[%c17_5, %c0_6] : memref<18x128xbf16, #tpu.memory_space<vmem>>, vector<1x128xbf16>
    tpu.vector_store %arg8[%c17_5, %c0_6], %1 {strides = array<i32>} : memref<18x128xbf16, #tpu.memory_space<vmem>>, vector<1x128xbf16>,
    %c0_7 = arith.constant 0 : index
    %c0_8 = arith.constant 0 : index
    %c0_9 = arith.constant 0 : index
    %6 = vector.load %arg1[%c0_7, %c0_8, %c0_9] : memref<1x16x64xbf16, #tpu.memory_space<vmem>>, vector<1x16x64xbf16>
    %7 = vector.shape_cast %6 : vector<1x16x64xbf16> to vector<16x64xbf16>
    %c1 = arith.constant 1 : index
    %c0_10 = arith.constant 0 : index
    %8 = vector.load %arg7[%c1, %c0_10] : memref<18x64xbf16, #tpu.memory_space<vmem>>, vector<16x64xbf16>
    tpu.vector_store %arg7[%c1, %c0_10], %7 {strides = array<i32>} : memref<18x64xbf16, #tpu.memory_space<vmem>>, vector<16x64xbf16>,
    %c0_11 = arith.constant 0 : index
    %c0_12 = arith.constant 0 : index
    %9 = vector.load %arg7[%c0_11, %c0_12] : memref<18x64xbf16, #tpu.memory_space<vmem>>, vector<16x64xbf16>
    %c0_13 = arith.constant 0 : index
    %c0_14 = arith.constant 0 : index
    %c0_15 = arith.constant 0 : index
    %10 = vector.load %arg2[%c0_13, %c0_14, %c0_15] : memref<3x64x128xbf16, #tpu.memory_space<vmem>>, vector<1x64x128xbf16>
    %11 = vector.shape_cast %10 : vector<1x64x128xbf16> to vector<64x128xbf16>
    %cst_16 = arith.constant dense<0.000000e+00> : vector<16x128xf32>
    %12 = tpu.matmul %9, %11, %cst_16 {dimension_numbers = #tpu.dot_dimension_numbers<[1], [0], [0], [1], [0, 0, 1, 1], [], []>} : vector<16x64xbf16>, vector<64x128xbf16>, vector<16x128xf32> -> vector<16x128xf32>
    %c1_17 = arith.constant 1 : index
    %c0_18 = arith.constant 0 : index
    %13 = vector.load %arg7[%c1_17, %c0_18] : memref<18x64xbf16, #tpu.memory_space<vmem>>, vector<16x64xbf16>
    %c1_19 = arith.constant 1 : index
    %c0_20 = arith.constant 0 : index
    %c0_21 = arith.constant 0 : index
    %14 = vector.load %arg2[%c1_19, %c0_20, %c0_21] : memref<3x64x128xbf16, #tpu.memory_space<vmem>>, vector<1x64x128xbf16>
    %15 = vector.shape_cast %14 : vector<1x64x128xbf16> to vector<64x128xbf16>
    %cst_22 = arith.constant dense<0.000000e+00> : vector<16x128xf32>
    %16 = tpu.matmul %13, %15, %cst_22 {dimension_numbers = #tpu.dot_dimension_numbers<[1], [0], [0], [1], [0, 0, 1, 1], [], []>} : vector<16x64xbf16>, vector<64x128xbf16>, vector<16x128xf32> -> vector<16x128xf32>
    %17 = arith.addf %12, %16 : vector<16x128xf32>
    %c2 = arith.constant 2 : index
    %c0_23 = arith.constant 0 : index
    %18 = vector.load %arg7[%c2, %c0_23] : memref<18x64xbf16, #tpu.memory_space<vmem>>, vector<16x64xbf16>
    %c2_24 = arith.constant 2 : index
    %c0_25 = arith.constant 0 : index
    %c0_26 = arith.constant 0 : index
    %19 = vector.load %arg2[%c2_24, %c0_25, %c0_26] : memref<3x64x128xbf16, #tpu.memory_space<vmem>>, vector<1x64x128xbf16>
    %20 = vector.shape_cast %19 : vector<1x64x128xbf16> to vector<64x128xbf16>
    %cst_27 = arith.constant dense<0.000000e+00> : vector<16x128xf32>
    %21 = tpu.matmul %18, %20, %cst_27 {dimension_numbers = #tpu.dot_dimension_numbers<[1], [0], [0], [1], [0, 0, 1, 1], [], []>} : vector<16x64xbf16>, vector<64x128xbf16>, vector<16x128xf32> -> vector<16x128xf32>
    %22 = arith.addf %17, %21 : vector<16x128xf32>
    %c0_28 = arith.constant 0 : index
    %c0_29 = arith.constant 0 : index
    %23 = vector.load %arg3[%c0_28, %c0_29] : memref<1x128xf32, #tpu.memory_space<vmem>>, vector<1x128xf32>
    %24 = vector.shape_cast %23 : vector<1x128xf32> to vector<128xf32>
    %25 = vector.shape_cast %24 : vector<128xf32> to vector<1x128xf32>
    %26 = vector.broadcast %25 : vector<1x128xf32> to vector<16x128xf32>
    %27 = arith.addf %22, %26 : vector<16x128xf32>
    %cst_30 = arith.constant 0.000000e+00 : f32
    %28 = vector.broadcast %cst_30 : f32 to vector<16x128xf32>
    %29 = arith.maximumf %27, %28 : vector<16x128xf32>
    %30 = arith.truncf %29 : vector<16x128xf32> to vector<16x128xbf16>
    %c1_31 = arith.constant 1 : index
    %c0_32 = arith.constant 0 : index
    %31 = vector.load %arg8[%c1_31, %c0_32] : memref<18x128xbf16, #tpu.memory_space<vmem>>, vector<16x128xbf16>
    tpu.vector_store %arg8[%c1_31, %c0_32], %30 {strides = array<i32>} : memref<18x128xbf16, #tpu.memory_space<vmem>>, vector<16x128xbf16>,
    %c0_33 = arith.constant 0 : index
    %c0_34 = arith.constant 0 : index
    %32 = vector.load %arg8[%c0_33, %c0_34] : memref<18x128xbf16, #tpu.memory_space<vmem>>, vector<16x128xbf16>
    %c0_35 = arith.constant 0 : index
    %c0_36 = arith.constant 0 : index
    %c0_37 = arith.constant 0 : index
    %33 = vector.load %arg4[%c0_35, %c0_36, %c0_37] : memref<3x128x512xbf16, #tpu.memory_space<vmem>>, vector<1x128x512xbf16>
    %34 = vector.shape_cast %33 : vector<1x128x512xbf16> to vector<128x512xbf16>
    %cst_38 = arith.constant dense<0.000000e+00> : vector<16x512xf32>
    %35 = tpu.matmul %32, %34, %cst_38 {dimension_numbers = #tpu.dot_dimension_numbers<[1], [0], [0], [1], [0, 0, 1, 1], [], []>} : vector<16x128xbf16>, vector<128x512xbf16>, vector<16x512xf32> -> vector<16x512xf32>
    %c1_39 = arith.constant 1 : index
    %c0_40 = arith.constant 0 : index
    %36 = vector.load %arg8[%c1_39, %c0_40] : memref<18x128xbf16, #tpu.memory_space<vmem>>, vector<16x128xbf16>
    %c1_41 = arith.constant 1 : index
    %c0_42 = arith.constant 0 : index
    %c0_43 = arith.constant 0 : index
    %37 = vector.load %arg4[%c1_41, %c0_42, %c0_43] : memref<3x128x512xbf16, #tpu.memory_space<vmem>>, vector<1x128x512xbf16>
    %38 = vector.shape_cast %37 : vector<1x128x512xbf16> to vector<128x512xbf16>
    %cst_44 = arith.constant dense<0.000000e+00> : vector<16x512xf32>
    %39 = tpu.matmul %36, %38, %cst_44 {dimension_numbers = #tpu.dot_dimension_numbers<[1], [0], [0], [1], [0, 0, 1, 1], [], []>} : vector<16x128xbf16>, vector<128x512xbf16>, vector<16x512xf32> -> vector<16x512xf32>
    %40 = arith.addf %35, %39 : vector<16x512xf32>
    %c2_45 = arith.constant 2 : index
    %c0_46 = arith.constant 0 : index
    %41 = vector.load %arg8[%c2_45, %c0_46] : memref<18x128xbf16, #tpu.memory_space<vmem>>, vector<16x128xbf16>
    %c2_47 = arith.constant 2 : index
    %c0_48 = arith.constant 0 : index
    %c0_49 = arith.constant 0 : index
    %42 = vector.load %arg4[%c2_47, %c0_48, %c0_49] : memref<3x128x512xbf16, #tpu.memory_space<vmem>>, vector<1x128x512xbf16>
    %43 = vector.shape_cast %42 : vector<1x128x512xbf16> to vector<128x512xbf16>
    %cst_50 = arith.constant dense<0.000000e+00> : vector<16x512xf32>
    %44 = tpu.matmul %41, %43, %cst_50 {dimension_numbers = #tpu.dot_dimension_numbers<[1], [0], [0], [1], [0, 0, 1, 1], [], []>} : vector<16x128xbf16>, vector<128x512xbf16>, vector<16x512xf32> -> vector<16x512xf32>
    %45 = arith.addf %40, %44 : vector<16x512xf32>
    %c0_51 = arith.constant 0 : index
    %c0_52 = arith.constant 0 : index
    %46 = vector.load %arg5[%c0_51, %c0_52] : memref<1x512xf32, #tpu.memory_space<vmem>>, vector<1x512xf32>
    %47 = vector.shape_cast %46 : vector<1x512xf32> to vector<512xf32>
    %48 = vector.shape_cast %47 : vector<512xf32> to vector<1x512xf32>
    %49 = vector.broadcast %48 : vector<1x512xf32> to vector<16x512xf32>
    %50 = arith.addf %45, %49 : vector<16x512xf32>
    %cst_53 = arith.constant 0.000000e+00 : f32
    %51 = vector.broadcast %cst_53 : f32 to vector<16x512xf32>
    %52 = arith.maximumf %50, %51 : vector<16x512xf32>
    %c0_54 = arith.constant 0 : index
    %c0_55 = arith.constant 0 : index
    %c0_56 = arith.constant 0 : index
    %53 = vector.load %arg6[%c0_54, %c0_55, %c0_56] : memref<1x16x512xf32, #tpu.memory_space<vmem>>, vector<1x16x512xf32>
    %54 = vector.shape_cast %53 : vector<1x16x512xf32> to vector<16x512xf32>
    %55 = vector.shape_cast %52 : vector<16x512xf32> to vector<1x16x512xf32>
    tpu.vector_store %arg6[%c0_54, %c0_55, %c0_56], %55 {strides = array<i32>} : memref<1x16x512xf32, #tpu.memory_space<vmem>>, vector<1x16x512xf32>,
    return
  }
  func.func @transform_0(%arg0: i32) -> (i32, i32, i32) {
    %c0_i32 = arith.constant 0 : i32
    %c0_i32_0 = arith.constant 0 : i32
    %c0_i32_1 = arith.constant 0 : i32
    return %arg0, %c0_i32, %c0_i32_0 : i32, i32, i32
  }
  func.func @transform_1(%arg0: i32) -> (i32, i32, i32) {
    %c0_i32 = arith.constant 0 : i32
    %c0_i32_0 = arith.constant 0 : i32
    %c0_i32_1 = arith.constant 0 : i32
    %c0_i32_2 = arith.constant 0 : i32
    return %c0_i32, %c0_i32_0, %c0_i32_1 : i32, i32, i32
  }
  func.func @transform_2(%arg0: i32) -> (i32, i32) {
    %c0_i32 = arith.constant 0 : i32
    %c0_i32_0 = arith.constant 0 : i32
    %c0_i32_1 = arith.constant 0 : i32
    return %c0_i32, %c0_i32_0 : i32, i32
  }
  func.func @transform_3(%arg0: i32) -> (i32, i32, i32) {
    %c0_i32 = arith.constant 0 : i32
    %c0_i32_0 = arith.constant 0 : i32
    %c0_i32_1 = arith.constant 0 : i32
    %c0_i32_2 = arith.constant 0 : i32
    return %c0_i32, %c0_i32_0, %c0_i32_1 : i32, i32, i32
  }
  func.func @transform_4(%arg0: i32) -> (i32, i32) {
    %c0_i32 = arith.constant 0 : i32
    %c0_i32_0 = arith.constant 0 : i32
    %c0_i32_1 = arith.constant 0 : i32
    return %c0_i32, %c0_i32_0 : i32, i32
  }
  func.func @transform_5(%arg0: i32) -> (i32, i32, i32) {
    %c0_i32 = arith.constant 0 : i32
    %c0_i32_0 = arith.constant 0 : i32
    %c0_i32_1 = arith.constant 0 : i32
    return %arg0, %c0_i32, %c0_i32_0 : i32, i32, i32
  }
}

</mosaic_0001>

<llo_original>
// kernel: decoder_block_v2_forward.1
$region0: #{decoder_block_v2_forward.1}
  #allocation0 [shape = 'u32[]', space=smem, size = 0x4, offset = 0x4, fixed_abs, tag = 'smem constant byte address 0x4 - core index']
  #allocation1 [shape = 'u32[144,128]{1,0:T(1,128)}', space=vmem, size = 0x12000, scoped, tag = 'internal scratch']
  #allocation2 [shape = 'bf16[18,64]{1,0:T(8,128)(2,1)}', space=vmem, size = 0x1800, scoped, tag = 'scratch operand']
  #allocation3 [shape = 'bf16[18,128]{1,0:T(8,128)(2,1)}', space=vmem, size = 0x1800, scoped, tag = 'scratch operand']
  %s0 = inlined_call_operand.vmem [shape: bf16[2,16,64], index: 0, kind: input, shape index: {}]
  %s1 = inlined_call_operand.vmem [shape: bf16[3,64,128], index: 1, kind: input, shape index: {}]
  %s2 = inlined_call_operand.vmem [shape: f32[1,128], index: 2, kind: input, shape index: {}]
  %s3 = inlined_call_operand.hbm [shape: bf16[3,128,512], index: 3, kind: input, shape index: {}]
  %s4 = inlined_call_operand.vmem [shape: f32[1,512], index: 4, kind: input, shape index: {}]
  %s5 = inlined_call_operand.vmem [shape: f32[2,16,512], index: 5, kind: output, shape index: {}]
  %s6 = sld [smem:[#allocation0]]
  $region57: #{decoder_block_v2_forward.1} parent=0
    _
  %s8 = ssub.s32 1, %s6
  %s9 = scalar_select 0, %s8, %s6
  $region1: #{decoder_block_v2_forward.1} parent=0
    #allocation4 [shape = 'u8[393216]{0}', space=vmem, size = 0x60000, scoped, tag = 'input window, operand 3, single buffered']
    #allocation5 [shape = 's32[2]{0}', space=sflag, size = 0x8, scoped, tag = 'scoped memory for decoder_block_v2_forward.1']
    %10 = vsyncpa [#allocation5], 0
    loop: start=0, step=1, limit=4
    $region2: #{decoder_block_v2_forward.1} parent=1 // loop_pre_header
      _
    $region3: #{decoder_block_v2_forward.1} parent=1 // loop_header
      %s12 = sphi 0, %s16
      %p13 = scmp.ge.s32.totalorder %s12, 4
      %s22 = sphi 0, %s24
      %s25 = sphi 0, %s22
      %s26 = sphi 0, %s25
      %s42 = sphi 0, %s26
      %s46 = sphi 0, %s46
      %s48 = sphi 0, %s46
      %s49 = sphi 0, %s48
      %s63 = sphi 0, %s49
      %s67 = sphi 0, %s67
      %s69 = sphi 0, %s67
      %s70 = sphi 0, %s69
      %s84 = sphi 0, %s70
      %s88 = sphi 0, %s88
      %s90 = sphi 0, %s88
      %s91 = sphi 0, %s90
      %s105 = sphi 0, %s91
      %s109 = sphi 0, %s109
      %s111 = sphi 0, %s109
      %s112 = sphi 0, %s111
      %s126 = sphi 0, %s112
      %s132 = sphi 0, %s134
      %s135 = sphi 0, %s132
      %s136 = sphi 0, %s135
      %s152 = sphi 0, %s136
    $region4: #{decoder_block_v2_forward.1} parent=1 // loop_header_branch
      %15 = sbr.rel (%p13) target = $region8
    $region5: #{decoder_block_v2_forward.1} parent=1 // loop_body
      %s17 = ssub.s32 %s12, 1
      %s18 = ssub.s32 %s12, 2
      %s19 = sadd.s32 %s12, 1
      %s20 = ssub.s32 %s12, %s19
      %p21 = scmp.eq.s32.totalorder %s20, 0
      %s23 = sadd.s32 %s22, 1
      %s24 = scalar_select %p21, %s22, %s23
      %p27 = pneg %p21
      %p28 = scmp.eq.s32.totalorder %s12, 1
      %p29 = por %p27, %p28
      %p30 = scmp.ne.s32.totalorder %s22, %s25
      %p31 = scmp.eq.s32.totalorder %s12, 0
      %p32 = por %p30, %p31
      %p33 = scmp.ne.s32.totalorder %s22, %s25
      %p34 = scmp.eq.s32.totalorder %s17, 1
      %p35 = por %p33, %p34
      %p36 = scmp.ne.s32.totalorder %s25, %s26
      %p37 = scmp.eq.s32.totalorder %s17, 0
      %p38 = por %p36, %p37
      %p39 = scmp.ne.s32.totalorder %s25, %s26
      %p40 = scmp.eq.s32.totalorder %s18, 1
      %p41 = por %p39, %p40
      %p43 = scmp.ne.s32.totalorder %s26, %s42
      %p44 = scmp.eq.s32.totalorder %s18, 0
      %p45 = por %p43, %p44
      %s47 = sadd.s32 %s46, 1
      %p50 = scmp.eq.s32.totalorder %s12, 1
      %p51 = scmp.ne.s32.totalorder %s46, %s48
      %p52 = scmp.eq.s32.totalorder %s12, 0
      %p53 = por %p51, %p52
      %p54 = scmp.ne.s32.totalorder %s46, %s48
      %p55 = scmp.eq.s32.totalorder %s17, 1
      %p56 = por %p54, %p55
      %p57 = scmp.ne.s32.totalorder %s48, %s49
      %p58 = scmp.eq.s32.totalorder %s17, 0
      %p59 = por %p57, %p58
      %p60 = scmp.ne.s32.totalorder %s48, %s49
      %p61 = scmp.eq.s32.totalorder %s18, 1
      %p62 = por %p60, %p61
      %p64 = scmp.ne.s32.totalorder %s49, %s63
      %p65 = scmp.eq.s32.totalorder %s18, 0
      %p66 = por %p64, %p65
      %s68 = sadd.s32 %s67, 1
      %p71 = scmp.eq.s32.totalorder %s12, 1
      %p72 = scmp.ne.s32.totalorder %s67, %s69
      %p73 = scmp.eq.s32.totalorder %s12, 0
      %p74 = por %p72, %p73
      %p75 = scmp.ne.s32.totalorder %s67, %s69
      %p76 = scmp.eq.s32.totalorder %s17, 1
      %p77 = por %p75, %p76
      %p78 = scmp.ne.s32.totalorder %s69, %s70
      %p79 = scmp.eq.s32.totalorder %s17, 0
      %p80 = por %p78, %p79
      %p81 = scmp.ne.s32.totalorder %s69, %s70
      %p82 = scmp.eq.s32.totalorder %s18, 1
      %p83 = por %p81, %p82
      %p85 = scmp.ne.s32.totalorder %s70, %s84
      %p86 = scmp.eq.s32.totalorder %s18, 0
      %p87 = por %p85, %p86
      %s89 = sadd.s32 %s88, 1
      %p92 = scmp.eq.s32.totalorder %s12, 1
      %p93 = scmp.ne.s32.totalorder %s88, %s90
      %p94 = scmp.eq.s32.totalorder %s12, 0
      %p95 = por %p93, %p94
      %p96 = scmp.ne.s32.totalorder %s88, %s90
      %p97 = scmp.eq.s32.totalorder %s17, 1
      %p98 = por %p96, %p97
      %p99 = scmp.ne.s32.totalorder %s90, %s91
      %p100 = scmp.eq.s32.totalorder %s17, 0
      %p101 = por %p99, %p100
      %p102 = scmp.ne.s32.totalorder %s90, %s91
      %p103 = scmp.eq.s32.totalorder %s18, 1
      %p104 = por %p102, %p103
      %p106 = scmp.ne.s32.totalorder %s91, %s105
      %p107 = scmp.eq.s32.totalorder %s18, 0
      %p108 = por %p106, %p107
      %s110 = sadd.s32 %s109, 1
      %p113 = scmp.eq.s32.totalorder %s12, 1
      %p114 = scmp.ne.s32.totalorder %s109, %s111
      %p115 = scmp.eq.s32.totalorder %s12, 0
      %p116 = por %p114, %p115
      %p117 = scmp.ne.s32.totalorder %s109, %s111
      %p118 = scmp.eq.s32.totalorder %s17, 1
      %p119 = por %p117, %p118
      %p120 = scmp.ne.s32.totalorder %s111, %s112
      %p121 = scmp.eq.s32.totalorder %s17, 0
      %p122 = por %p120, %p121
      %p123 = scmp.ne.s32.totalorder %s111, %s112
      %p124 = scmp.eq.s32.totalorder %s18, 1
      %p125 = por %p123, %p124
      %p127 = scmp.ne.s32.totalorder %s112, %s126
      %p128 = scmp.eq.s32.totalorder %s18, 0
      %p129 = por %p127, %p128
      %s130 = ssub.s32 %s12, %s19
      %p131 = scmp.eq.s32.totalorder %s130, 0
      %s133 = sadd.s32 %s132, 1
      %s134 = scalar_select %p131, %s132, %s133
      %p137 = pneg %p131
      %p138 = scmp.eq.s32.totalorder %s12, 1
      %p139 = por %p137, %p138
      %p140 = scmp.ne.s32.totalorder %s132, %s135
      %p141 = scmp.eq.s32.totalorder %s12, 0
      %p142 = por %p140, %p141
      %p143 = scmp.ne.s32.totalorder %s132, %s135
      %p144 = scmp.eq.s32.totalorder %s17, 1
      %p145 = por %p143, %p144
      %p146 = scmp.ne.s32.totalorder %s135, %s136
      %p147 = scmp.eq.s32.totalorder %s17, 0
      %p148 = por %p146, %p147
      %p149 = scmp.ne.s32.totalorder %s135, %s136
      %p150 = scmp.eq.s32.totalorder %s18, 1
      %p151 = por %p149, %p150
      %p153 = scmp.ne.s32.totalorder %s136, %s152
      %p154 = scmp.eq.s32.totalorder %s18, 0
      %p155 = por %p153, %p154
      %p156 = scmp.le.s32.totalorder 1, %s12
      %p157 = scmp.lt.s32.totalorder %s12, 3
      %p158 = pnand %p156, %p157
      %p159 = pneg %p158
      // Predicated region
      $region9: #{decoder_block_v2_forward.1} parent=5 // pred_check
        _
      $region10: #{decoder_block_v2_forward.1} parent=5 // pred_check_branch
        %161 = sbr.rel (%p158) target = $region12
      $region11: #{decoder_block_v2_forward.1} parent=5 // pred_region
        %s162 = ssub.s32 %s12, 1
        // Predicated region
        $region13: #{decoder_block_v2_forward.1} parent=11 // pred_check
          %p163 = pneg %p59
        $region14: #{decoder_block_v2_forward.1} parent=11 // pred_check_branch
          %165 = sbr.rel (%p163) target = $region16
        $region15: #{decoder_block_v2_forward.1} parent=11 // pred_region
          _
        $region16: #{decoder_block_v2_forward.1} parent=11 // pred_fallthru
          _
        // Predicated region
        $region17: #{decoder_block_v2_forward.1} parent=11 // pred_check
          %p166 = pneg %p80
        $region18: #{decoder_block_v2_forward.1} parent=11 // pred_check_branch
          %168 = sbr.rel (%p166) target = $region20
        $region19: #{decoder_block_v2_forward.1} parent=11 // pred_region
          _
        $region20: #{decoder_block_v2_forward.1} parent=11 // pred_fallthru
          _
        // Predicated region
        $region21: #{decoder_block_v2_forward.1} parent=11 // pred_check
          %p169 = pneg %p101
        $region22: #{decoder_block_v2_forward.1} parent=11 // pred_check_branch
          %171 = sbr.rel (%p169) target = $region24
        $region23: #{decoder_block_v2_forward.1} parent=11 // pred_region
          %s173 = ssub.s32 12288, 12288
          %174 = vsyncadd [#allocation5], %s173
          %s175 = sshll.u32 [#allocation4], 4
          %s176 = int_to_ptr.vmem [resolvable:$true] %s175
          %181 = dma.hbm_to_vmem [thread:$0]  %s3, 12288, %s176, [#allocation5], 256, 256, 16
        $region24: #{decoder_block_v2_forward.1} parent=11 // pred_fallthru
          _
        // Predicated region
        $region25: #{decoder_block_v2_forward.1} parent=11 // pred_check
          %p182 = pneg %p122
        $region26: #{decoder_block_v2_forward.1} parent=11 // pred_check_branch
          %184 = sbr.rel (%p182) target = $region28
        $region27: #{decoder_block_v2_forward.1} parent=11 // pred_region
          _
        $region28: #{decoder_block_v2_forward.1} parent=11 // pred_fallthru
          _
      $region12: #{decoder_block_v2_forward.1} parent=5 // pred_fallthru
        _
      %p185 = scmp.lt.s32.totalorder %s12, 2
      // Predicated region
      $region29: #{decoder_block_v2_forward.1} parent=5 // pred_check
        %p186 = pneg %p185
      $region30: #{decoder_block_v2_forward.1} parent=5 // pred_check_branch
        %188 = sbr.rel (%p186) target = $region32
      $region31: #{decoder_block_v2_forward.1} parent=5 // pred_region
        // Predicated region
        $region33: #{decoder_block_v2_forward.1} parent=31 // pred_check
          %p189 = pneg %p32
        $region34: #{decoder_block_v2_forward.1} parent=31 // pred_check_branch
          %191 = sbr.rel (%p189) target = $region36
        $region35: #{decoder_block_v2_forward.1} parent=31 // pred_region
          %p192 = scmp.lt.s32.totalorder %s12, 1
          %s193 = scalar_select %p192, %s12, 1
          %s194 = smul.addr %s193, 2
          %s195 = smul.addr %s194, 4
          %s196 = scalar_lea.vmem %s0, %s195
        $region36: #{decoder_block_v2_forward.1} parent=31 // pred_fallthru
          _
      $region32: #{decoder_block_v2_forward.1} parent=5 // pred_fallthru
        _
      %p197 = scmp.le.s32.totalorder 1, %s12
      %p198 = scmp.lt.s32.totalorder %s12, 3
      %p199 = pnand %p197, %p198
      %p200 = pneg %p199
      // Predicated region
      $region37: #{decoder_block_v2_forward.1} parent=5 // pred_check
        _
      $region38: #{decoder_block_v2_forward.1} parent=5 // pred_check_branch
        %202 = sbr.rel (%p199) target = $region40
      $region39: #{decoder_block_v2_forward.1} parent=5 // pred_region
        %s203 = ssub.s32 %s12, 1
        // Predicated region
        $region41: #{decoder_block_v2_forward.1} parent=39 // pred_check
          %p204 = pneg %p101
        $region42: #{decoder_block_v2_forward.1} parent=39 // pred_check_branch
          %206 = sbr.rel (%p204) target = $region44
        $region43: #{decoder_block_v2_forward.1} parent=39 // pred_region
          %207 = dma.done [#allocation5], 12288
        $region44: #{decoder_block_v2_forward.1} parent=39 // pred_fallthru
          _
        %p208 = scmp.lt.s32.totalorder %s17, 1
        %s209 = scalar_select %p208, %s17, 1
        %s210 = smul.addr %s209, 2
        %s211 = smul.addr %s210, 4
        %s212 = scalar_lea.vmem %s0, %s211
        %p213 = pneg %p38
        %p214 = pneg %p35
        %p215 = pneg %p59
        %p216 = pneg %p56
        %p217 = pneg %p80
        %p218 = pneg %p77
        %p219 = pneg %p101
        %p220 = pneg %p98
        %p221 = pneg %p122
        %p222 = pneg %p119
        %p223 = pneg %p148
        %p224 = pneg %p145
        %p225 = scmp.lt.s32.totalorder %s17, 1
        %s226 = scalar_select %p225, %s17, 1
        %s227 = smul.addr %s226, 8
        %s228 = smul.addr %s227, 8
        %s229 = scalar_lea.vmem %s5, %s228
        %p230 = scmp.lt.s32.totalorder %s17, 1
        %s231 = scalar_select %p230, %s17, 1
        %s232 = smul.addr %s231, 2
        %s233 = smul.addr %s232, 4
        %s234 = scalar_lea.vmem %s0, %s233
        %p235 = scmp.lt.s32.totalorder %s17, 1
        %s236 = scalar_select %p235, %s17, 1
        %s237 = smul.addr %s236, 8
        %s238 = smul.addr %s237, 8
        %s239 = scalar_lea.vmem %s5, %s238
        %vm241 = vcmask 516096
        %vm242 = vsmask.f32 256
        %vm243 = vmand %vm241, %vm242
        %v244 = vld [vmem:[#allocation2] sm:$0x1]
        %v245 = vsel %vm243, 0, %v244
        %246 = vst [vmem:[#allocation2] sm:$0x1] %v245
        %vm247 = vsmask.f32 7938
        %vm248 = vmand %vm241, %vm247
        %v249 = vld [vmem:[#allocation2 + $0x8] sm:$0x1]
        %v250 = vsel %vm248, 0, %v249
        %251 = vst [vmem:[#allocation2 + $0x8] sm:$0x1] %v250
        %vm252 = vcmask 1040384
        %vm253 = vmand %vm252, %vm242
        %v254 = vld [vmem:[#allocation3] sm:$0x1]
        %v255 = vsel %vm253, 0, %v254
        %256 = vst [vmem:[#allocation3] sm:$0x1] %v255
        %vm257 = vmand %vm252, %vm247
        %v258 = vld [vmem:[#allocation3 + $0x8] sm:$0x1]
        %v259 = vsel %vm257, 0, %v258
        %260 = vst [vmem:[#allocation3 + $0x8] sm:$0x1] %v259
        %v261 = vld [vmem:[%s234] sm:$0xf]
        %v262 = vld [vmem:[%s234 + $0x4] sm:$0xf]
        %vm263 = vsmask.f32 4368
        %vm264 = vmor %vm242, %vm263
        %v266 = vshrl.u32 %v261, 16
        %v268 = vrot.slane %v266, 7
        %v269 = vshll.u32 %v261, 16
        %v271 = vor.u32 %v268, %v269
        %v272 = vrot.slane %v268, 4
        %v274 = vshrl.u32 %v262, 16
        %v276 = vrot.slane %v274, 7
        %v277 = vshll.u32 %v262, 16
        %v279 = vor.u32 %v276, %v277
        %v280 = vsel %vm264, %v272, %v279
        %v281 = vrot.slane %v276, 4
        %vm285 = vcmask 519168
        %vm286 = vmand %vm285, %vm247
        %v287 = vld [vmem:[#allocation2] sm:$0xf]
        %v288 = vsel %vm286, %v271, %v287
        %289 = vst [vmem:[#allocation2] sm:$0xf] %v288
        %vm290 = vcmask 519168
        %291 = vst.msk [vmem:[#allocation2 + $0x4] sm:$0xf] %vm290, %v280
        %v292 = vld [vmem:[#allocation2 + $0x8] sm:$0x1]
        %v293 = vsel %vm243, %v281, %v292
        %294 = vst [vmem:[#allocation2 + $0x8] sm:$0x1] %v293
        %v295 = vld [vmem:[#allocation2] sm:$0xf]
        %v296 = vld [vmem:[#allocation2 + $0x4] sm:$0xf]
        %v297 = vld [vmem:[%s1] sm:$0xf]
        %v298 = vld [vmem:[%s1 + $0x4] sm:$0xf]
        %v299 = vld [vmem:[%s1 + $0x8] sm:$0xf]
        %v300 = vld [vmem:[%s1 + $0xc] sm:$0xf]
        %v301 = vld [vmem:[%s1 + $0x10] sm:$0xf]
        %v302 = vld [vmem:[%s1 + $0x14] sm:$0xf]
        %v303 = vld [vmem:[%s1 + $0x18] sm:$0xf]
        %v304 = vld [vmem:[%s1 + $0x1c] sm:$0xf]
        %v305 = vld [vmem:[#allocation2 + $0x8] sm:$0x1]
        %s306 = scalar_lea.vmem %s1, 32
        %v307 = vld [vmem:[%s306] sm:$0xf]
        %v308 = vld [vmem:[%s306 + $0x4] sm:$0xf]
        %v309 = vld [vmem:[%s306 + $0x8] sm:$0xf]
        %v310 = vld [vmem:[%s306 + $0xc] sm:$0xf]
        %v311 = vld [vmem:[%s306 + $0x10] sm:$0xf]
        %v312 = vld [vmem:[%s306 + $0x14] sm:$0xf]
        %v313 = vld [vmem:[%s306 + $0x18] sm:$0xf]
        %v314 = vld [vmem:[%s306 + $0x1c] sm:$0xf]
        %v318 = vunpack.c.l.b16 %v295
        %v319 = vunpack.c.l.b16 %v296
        %v320 = vunpack.c.l.b16 %v305
        %v321 = vpack.c.b16 %v319, %v318
        %v322 = vpack.c.b16 %v320, %v320
        %vm323 = vsmask.f32 7424
        %v325 = vshrl.u32 %v321, 16
        %v327 = vshll.u32 %v321, 16
        %v329 = vrot.slane %v327, 1
        %v330 = vor.u32 %v325, %v329
        %v332 = vshll.u32 %v322, 16
        %v334 = vrot.slane %v332, 1
        %v335 = vsel %vm323, %v330, %v334
        %v344 = vunpack.c.l.b16 %v307
        %v345 = vunpack.c.l.b16 %v308
        %v346 = vunpack.c.l.b16 %v309
        %v347 = vunpack.c.l.b16 %v310
        %v348 = vunpack.c.l.b16 %v311
        %v349 = vunpack.c.l.b16 %v312
        %v350 = vunpack.c.l.b16 %v313
        %v351 = vunpack.c.l.b16 %v314
        %v352 = vpack.c.b16 %v345, %v344
        %v353 = vpack.c.b16 %v347, %v346
        %v354 = vpack.c.b16 %v349, %v348
        %v355 = vpack.c.b16 %v351, %v350
        %vm360 = vcmask 523264
        %v362 = vsel %vm360, %v335, 0
        %364 = vmatprep.subr.bf16.mxu0 0
        %365 = vmatpush1.bf16.msra.mxu0 0
        %366 = vmatprep.subr.bf16.mxu0 0
        %367 = vmatpush1.bf16.msra.mxu0 0
        %368 = vmatprep.subr.bf16.mxu0 0
        %369 = vmatpush1.bf16.msra.mxu0 0
        %370 = vmatprep.subr.bf16.mxu0 0
        %371 = vmatpush1.bf16.msra.mxu0 0
        %372 = vmatprep.subr.bf16.mxu0 0
        %373 = vmatpush1.bf16.msra.mxu0 %v355
        %374 = vmatprep.subr.bf16.mxu0 0
        %375 = vmatpush1.bf16.msra.mxu0 %v354
        %376 = vmatprep.subr.bf16.mxu0 0
        %377 = vmatpush1.bf16.msra.mxu0 %v353
        %378 = vmatprep.subr.bf16.mxu0 0
        %379 = vmatpush1.bf16.msra.mxu0 %v352
        %380 = vmatprep.subr.bf16.mxu0 0
        %381 = vmatpush2.bf16.msra.mxu0 0
        %382 = vmatprep.subr.bf16.mxu0 0
        %383 = vmatpush2.bf16.msra.mxu0 0
        %384 = vmatprep.subr.bf16.mxu0 0
        %385 = vmatpush2.bf16.msra.mxu0 0
        %386 = vmatprep.subr.bf16.mxu0 0
        %387 = vmatpush2.bf16.msra.mxu0 0
        %388 = vmatprep.subr.bf16.mxu0 0
        %389 = vmatpush2.bf16.msra.mxu0 0
        %390 = vmatprep.subr.bf16.mxu0 0
        %391 = vmatpush2.bf16.msra.mxu0 0
        %392 = vmatprep.subr.bf16.mxu0 0
        %393 = vmatpush2.bf16.msra.mxu0 0
        %394 = vmatprep.subr.bf16.mxu0 0
        %395 = vmatpush2.bf16.msra.mxu0 0
        %396 = vmatprep.mubr.bf16.mxu0 0
        %397 = vmatmul.mubr.bf16.gmra.mxu0 %v362
        %v398 = vpop.f32.mrf.mxu0
        %v399 = vadd.f32 0.0, %v398
        %v400 = vpop.f32.mrf.mxu0
        %v401 = vpop.f32.mrf.mxu0
        %v402 = vadd.f32 0.0, %v401
        %v403 = vpop.f32.mrf.mxu0
        %404 = vdwg.mxu0
        %v413 = vunpack.c.l.b16 %v297
        %v414 = vunpack.c.l.b16 %v298
        %v415 = vunpack.c.l.b16 %v299
        %v416 = vunpack.c.l.b16 %v300
        %v417 = vunpack.c.l.b16 %v301
        %v418 = vunpack.c.l.b16 %v302
        %v419 = vunpack.c.l.b16 %v303
        %v420 = vunpack.c.l.b16 %v304
        %v421 = vpack.c.b16 %v414, %v413
        %v422 = vpack.c.b16 %v416, %v415
        %v423 = vpack.c.b16 %v418, %v417
        %v424 = vpack.c.b16 %v420, %v419
        %v429 = vsel %vm360, %v321, 0
        %431 = vmatprep.subr.bf16.mxu0 0
        %432 = vmatpush1.bf16.msra.mxu0 0
        %433 = vmatprep.subr.bf16.mxu0 0
        %434 = vmatpush1.bf16.msra.mxu0 0
        %435 = vmatprep.subr.bf16.mxu0 0
        %436 = vmatpush1.bf16.msra.mxu0 0
        %437 = vmatprep.subr.bf16.mxu0 0
        %438 = vmatpush1.bf16.msra.mxu0 0
        %439 = vmatprep.subr.bf16.mxu0 0
        %440 = vmatpush1.bf16.msra.mxu0 %v424
        %441 = vmatprep.subr.bf16.mxu0 0
        %442 = vmatpush1.bf16.msra.mxu0 %v423
        %443 = vmatprep.subr.bf16.mxu0 0
        %444 = vmatpush1.bf16.msra.mxu0 %v422
        %445 = vmatprep.subr.bf16.mxu0 0
        %446 = vmatpush1.bf16.msra.mxu0 %v421
        %447 = vmatprep.subr.bf16.mxu0 0
        %448 = vmatpush2.bf16.msra.mxu0 0
        %449 = vmatprep.subr.bf16.mxu0 0
        %450 = vmatpush2.bf16.msra.mxu0 0
        %451 = vmatprep.subr.bf16.mxu0 0
        %452 = vmatpush2.bf16.msra.mxu0 0
        %453 = vmatprep.subr.bf16.mxu0 0
        %454 = vmatpush2.bf16.msra.mxu0 0
        %455 = vmatprep.subr.bf16.mxu0 0
        %456 = vmatpush2.bf16.msra.mxu0 0
        %457 = vmatprep.subr.bf16.mxu0 0
        %458 = vmatpush2.bf16.msra.mxu0 0
        %459 = vmatprep.subr.bf16.mxu0 0
        %460 = vmatpush2.bf16.msra.mxu0 0
        %461 = vmatprep.subr.bf16.mxu0 0
        %462 = vmatpush2.bf16.msra.mxu0 0
        %463 = vmatprep.mubr.bf16.mxu0 0
        %464 = vmatmul.mubr.bf16.gmra.mxu0 %v429
        %v465 = vpop.f32.mrf.mxu0
        %v466 = vadd.f32 %v399, %v465
        %v467 = vpop.f32.mrf.mxu0
        %v468 = vpop.f32.mrf.mxu0
        %v469 = vadd.f32 %v402, %v468
        %v470 = vpop.f32.mrf.mxu0
        %471 = vdwg.mxu0
        %v472 = vld [vmem:[#allocation2] sm:$0xe]
        %s473 = scalar_lea.vmem %s1, 64
        %v474 = vld [vmem:[%s473] sm:$0xf]
        %v475 = vld [vmem:[%s473 + $0x4] sm:$0xf]
        %v476 = vld [vmem:[%s473 + $0x8] sm:$0xf]
        %v477 = vld [vmem:[%s473 + $0xc] sm:$0xf]
        %v478 = vld [vmem:[%s473 + $0x10] sm:$0xf]
        %v479 = vld [vmem:[%s473 + $0x14] sm:$0xf]
        %v480 = vld [vmem:[%s473 + $0x18] sm:$0xf]
        %v481 = vld [vmem:[%s473 + $0x1c] sm:$0xf]
        %v483 = vunpack.c.l.b16 %v472
        %v484 = vpack.c.b16 %v319, %v483
        %vm485 = vcmask 1046528
        %v486 = vrot.slane %v484, 1
        %v487 = vrot.slane %v322, 1
        %v488 = vsel %vm485, %v486, %v487
        %v497 = vunpack.c.l.b16 %v474
        %v498 = vunpack.c.l.b16 %v475
        %v499 = vunpack.c.l.b16 %v476
        %v500 = vunpack.c.l.b16 %v477
        %v501 = vunpack.c.l.b16 %v478
        %v502 = vunpack.c.l.b16 %v479
        %v503 = vunpack.c.l.b16 %v480
        %v504 = vunpack.c.l.b16 %v481
        %v505 = vpack.c.b16 %v498, %v497
        %v506 = vpack.c.b16 %v500, %v499
        %v507 = vpack.c.b16 %v502, %v501
        %v508 = vpack.c.b16 %v504, %v503
        %v514 = vsel %vm360, %v488, 0
        %516 = vmatprep.subr.bf16.mxu0 0
        %517 = vmatpush1.bf16.msra.mxu0 0
        %518 = vmatprep.subr.bf16.mxu0 0
        %519 = vmatpush1.bf16.msra.mxu0 0
        %520 = vmatprep.subr.bf16.mxu0 0
        %521 = vmatpush1.bf16.msra.mxu0 0
        %522 = vmatprep.subr.bf16.mxu0 0
        %523 = vmatpush1.bf16.msra.mxu0 0
        %524 = vmatprep.subr.bf16.mxu0 0
        %525 = vmatpush1.bf16.msra.mxu0 %v508
        %526 = vmatprep.subr.bf16.mxu0 0
        %527 = vmatpush1.bf16.msra.mxu0 %v507
        %528 = vmatprep.subr.bf16.mxu0 0
        %529 = vmatpush1.bf16.msra.mxu0 %v506
        %530 = vmatprep.subr.bf16.mxu0 0
        %531 = vmatpush1.bf16.msra.mxu0 %v505
        %532 = vmatprep.subr.bf16.mxu0 0
        %533 = vmatpush2.bf16.msra.mxu0 0
        %534 = vmatprep.subr.bf16.mxu0 0
        %535 = vmatpush2.bf16.msra.mxu0 0
        %536 = vmatprep.subr.bf16.mxu0 0
        %537 = vmatpush2.bf16.msra.mxu0 0
        %538 = vmatprep.subr.bf16.mxu0 0
        %539 = vmatpush2.bf16.msra.mxu0 0
        %540 = vmatprep.subr.bf16.mxu0 0
        %541 = vmatpush2.bf16.msra.mxu0 0
        %542 = vmatprep.subr.bf16.mxu0 0
        %543 = vmatpush2.bf16.msra.mxu0 0
        %544 = vmatprep.subr.bf16.mxu0 0
        %545 = vmatpush2.bf16.msra.mxu0 0
        %546 = vmatprep.subr.bf16.mxu0 0
        %547 = vmatpush2.bf16.msra.mxu0 0
        %548 = vmatprep.mubr.bf16.mxu0 0
        %549 = vmatmul.mubr.bf16.gmra.mxu0 %v514
        %v550 = vpop.f32.mrf.mxu0
        %v551 = vadd.f32 0.0, %v550
        %v552 = vpop.f32.mrf.mxu0
        %v553 = vpop.f32.mrf.mxu0
        %v554 = vadd.f32 0.0, %v553
        %v555 = vpop.f32.mrf.mxu0
        %556 = vdwg.mxu0
        %v557 = vadd.f32 %v466, %v551
        %v558 = vadd.f32 %v469, %v554
        %v559 = vld [vmem:[%s2] sm:$0x1]
        %v561 = vlaneseq
        %v562 = vshrl.u32 %v561, 7
        %v563 = vsub.s32 0, %v562
        %v564 = vrot.slane %v559, %v563
        %v566 = vadd.f32 %v557, %v564
        %v567 = vadd.f32 %v558, %v564
        %v568 = vmax.f32 %v566, 0.0
        %v569 = vmax.f32 %v567, 0.0
        %v570 = vpack.c.bf16 %v569, %v568
        %v572 = vunpack.c.l.b16 %v570
        %v573 = vunpack.c.h.b16 %v570
        %v574 = vpack.c.b16 %v572, %v572
        %v575 = vpack.c.b16 %v573, %v573
        %v577 = vshrl.u32 %v574, 16
        %v579 = vrot.slane %v577, 7
        %v580 = vshll.u32 %v574, 16
        %v582 = vor.u32 %v579, %v580
        %v583 = vrot.slane %v579, 4
        %v585 = vshrl.u32 %v575, 16
        %v587 = vrot.slane %v585, 7
        %v588 = vshll.u32 %v575, 16
        %v590 = vor.u32 %v587, %v588
        %v591 = vsel %vm264, %v583, %v590
        %v592 = vrot.slane %v587, 4
        %vm596 = vcmask 1043456
        %vm597 = vmand %vm596, %vm247
        %v598 = vld [vmem:[#allocation3] sm:$0xf]
        %v599 = vsel %vm597, %v582, %v598
        %600 = vst [vmem:[#allocation3] sm:$0xf] %v599
        %601 = vst [vmem:[#allocation3 + $0x4] sm:$0xf] %v591
        %v602 = vld [vmem:[#allocation3 + $0x8] sm:$0x1]
        %v603 = vsel %vm253, %v592, %v602
        %604 = vst [vmem:[#allocation3 + $0x8] sm:$0x1] %v603
        %v605 = vld [vmem:[#allocation3] sm:$0xf]
        %v606 = vld [vmem:[#allocation3 + $0x4] sm:$0xf]
        %v607 = vld [vmem:[#allocation4] sm:$0xff]
        %v608 = vld [vmem:[#allocation4 + $0x8] sm:$0xff]
        %v609 = vld [vmem:[#allocation4 + $0x10] sm:$0xff]
        %v610 = vld [vmem:[#allocation4 + $0x18] sm:$0xff]
        %v611 = vld [vmem:[#allocation4 + $0x20] sm:$0xff]
        %v612 = vld [vmem:[#allocation4 + $0x28] sm:$0xff]
        %v613 = vld [vmem:[#allocation4 + $0x30] sm:$0xff]
        %v614 = vld [vmem:[#allocation4 + $0x38] sm:$0xff]
        %v615 = vld [vmem:[#allocation4 + $0x40] sm:$0xff]
        %v616 = vld [vmem:[#allocation4 + $0x48] sm:$0xff]
        %v617 = vld [vmem:[#allocation4 + $0x50] sm:$0xff]
        %v618 = vld [vmem:[#allocation4 + $0x58] sm:$0xff]
        %v619 = vld [vmem:[#allocation4 + $0x60] sm:$0xff]
        %v620 = vld [vmem:[#allocation4 + $0x68] sm:$0xff]
        %v621 = vld [vmem:[#allocation4 + $0x70] sm:$0xff]
        %v622 = vld [vmem:[#allocation4 + $0x78] sm:$0xff]
        %v623 = vld [vmem:[#allocation4 + $0x80] sm:$0xff]
        %v624 = vld [vmem:[#allocation4 + $0x88] sm:$0xff]
        %v625 = vld [vmem:[#allocation4 + $0x90] sm:$0xff]
        %v626 = vld [vmem:[#allocation4 + $0x98] sm:$0xff]
        %v627 = vld [vmem:[#allocation4 + $0xa0] sm:$0xff]
        %v628 = vld [vmem:[#allocation4 + $0xa8] sm:$0xff]
        %v629 = vld [vmem:[#allocation4 + $0xb0] sm:$0xff]
        %v630 = vld [vmem:[#allocation4 + $0xb8] sm:$0xff]
        %v631 = vld [vmem:[#allocation4 + $0xc0] sm:$0xff]
        %v632 = vld [vmem:[#allocation4 + $0xc8] sm:$0xff]
        %v633 = vld [vmem:[#allocation4 + $0xd0] sm:$0xff]
        %v634 = vld [vmem:[#allocation4 + $0xd8] sm:$0xff]
        %v635 = vld [vmem:[#allocation4 + $0xe0] sm:$0xff]
        %v636 = vld [vmem:[#allocation4 + $0xe8] sm:$0xff]
        %v637 = vld [vmem:[#allocation4 + $0xf0] sm:$0xff]
        %v638 = vld [vmem:[#allocation4 + $0xf8] sm:$0xff]
        %v639 = vld [vmem:[#allocation3 + $0x8] sm:$0x1]
        %s640 = scalar_lea.vmem [#allocation4], 256
        %v641 = vld [vmem:[%s640] sm:$0xff]
        %v642 = vld [vmem:[%s640 + $0x8] sm:$0xff]
        %v643 = vld [vmem:[%s640 + $0x10] sm:$0xff]
        %v644 = vld [vmem:[%s640 + $0x18] sm:$0xff]
        %v645 = vld [vmem:[%s640 + $0x20] sm:$0xff]
        %v646 = vld [vmem:[%s640 + $0x28] sm:$0xff]
        %v647 = vld [vmem:[%s640 + $0x30] sm:$0xff]
        %v648 = vld [vmem:[%s640 + $0x38] sm:$0xff]
        %v649 = vld [vmem:[%s640 + $0x40] sm:$0xff]
        %v650 = vld [vmem:[%s640 + $0x48] sm:$0xff]
        %v651 = vld [vmem:[%s640 + $0x50] sm:$0xff]
        %v652 = vld [vmem:[%s640 + $0x58] sm:$0xff]
        %v653 = vld [vmem:[%s640 + $0x60] sm:$0xff]
        %v654 = vld [vmem:[%s640 + $0x68] sm:$0xff]
        %v655 = vld [vmem:[%s640 + $0x70] sm:$0xff]
        %v656 = vld [vmem:[%s640 + $0x78] sm:$0xff]
        %v657 = vld [vmem:[%s640 + $0x80] sm:$0xff]
        %v658 = vld [vmem:[%s640 + $0x88] sm:$0xff]
        %v659 = vld [vmem:[%s640 + $0x90] sm:$0xff]
        %v660 = vld [vmem:[%s640 + $0x98] sm:$0xff]
        %v661 = vld [vmem:[%s640 + $0xa0] sm:$0xff]
        %v662 = vld [vmem:[%s640 + $0xa8] sm:$0xff]
        %v663 = vld [vmem:[%s640 + $0xb0] sm:$0xff]
        %v664 = vld [vmem:[%s640 + $0xb8] sm:$0xff]
        %v665 = vld [vmem:[%s640 + $0xc0] sm:$0xff]
        %v666 = vld [vmem:[%s640 + $0xc8] sm:$0xff]
        %v667 = vld [vmem:[%s640 + $0xd0] sm:$0xff]
        %v668 = vld [vmem:[%s640 + $0xd8] sm:$0xff]
        %v669 = vld [vmem:[%s640 + $0xe0] sm:$0xff]
        %v670 = vld [vmem:[%s640 + $0xe8] sm:$0xff]
        %v671 = vld [vmem:[%s640 + $0xf0] sm:$0xff]
        %v672 = vld [vmem:[%s640 + $0xf8] sm:$0xff]
        %v676 = vunpack.c.l.b16 %v605
        %v677 = vunpack.c.l.b16 %v606
        %v678 = vunpack.c.l.b16 %v639
        %v679 = vpack.c.b16 %v677, %v676
        %v680 = vpack.c.b16 %v678, %v678
        %v682 = vshrl.u32 %v679, 16
        %v684 = vshll.u32 %v679, 16
        %v686 = vrot.slane %v684, 1
        %v687 = vor.u32 %v682, %v686
        %v689 = vshll.u32 %v680, 16
        %v691 = vrot.slane %v689, 1
        %v692 = vsel %vm323, %v687, %v691
        %v726 = vunpack.c.l.b16 %v641
        %v727 = vunpack.c.h.b16 %v641
        %v728 = vunpack.c.l.b16 %v642
        %v729 = vunpack.c.h.b16 %v642
        %v730 = vunpack.c.l.b16 %v643
        %v731 = vunpack.c.h.b16 %v643
        %v732 = vunpack.c.l.b16 %v644
        %v733 = vunpack.c.h.b16 %v644
        %v734 = vunpack.c.l.b16 %v645
        %v735 = vunpack.c.h.b16 %v645
        %v736 = vunpack.c.l.b16 %v646
        %v737 = vunpack.c.h.b16 %v646
        %v738 = vunpack.c.l.b16 %v647
        %v739 = vunpack.c.h.b16 %v647
        %v740 = vunpack.c.l.b16 %v648
        %v741 = vunpack.c.h.b16 %v648
        %v742 = vunpack.c.l.b16 %v649
        %v743 = vunpack.c.h.b16 %v649
        %v744 = vunpack.c.l.b16 %v650
        %v745 = vunpack.c.h.b16 %v650
        %v746 = vunpack.c.l.b16 %v651
        %v747 = vunpack.c.h.b16 %v651
        %v748 = vunpack.c.l.b16 %v652
        %v749 = vunpack.c.h.b16 %v652
        %v750 = vunpack.c.l.b16 %v653
        %v751 = vunpack.c.h.b16 %v653
        %v752 = vunpack.c.l.b16 %v654
        %v753 = vunpack.c.h.b16 %v654
        %v754 = vunpack.c.l.b16 %v655
        %v755 = vunpack.c.h.b16 %v655
        %v756 = vunpack.c.l.b16 %v656
        %v757 = vunpack.c.h.b16 %v656
        %v758 = vunpack.c.l.b16 %v657
        %v759 = vunpack.c.h.b16 %v657
        %v760 = vunpack.c.l.b16 %v658
        %v761 = vunpack.c.h.b16 %v658
        %v762 = vunpack.c.l.b16 %v659
        %v763 = vunpack.c.h.b16 %v659
        %v764 = vunpack.c.l.b16 %v660
        %v765 = vunpack.c.h.b16 %v660
        %v766 = vunpack.c.l.b16 %v661
        %v767 = vunpack.c.h.b16 %v661
        %v768 = vunpack.c.l.b16 %v662
        %v769 = vunpack.c.h.b16 %v662
        %v770 = vunpack.c.l.b16 %v663
        %v771 = vunpack.c.h.b16 %v663
        %v772 = vunpack.c.l.b16 %v664
        %v773 = vunpack.c.h.b16 %v664
        %v774 = vunpack.c.l.b16 %v665
        %v775 = vunpack.c.h.b16 %v665
        %v776 = vunpack.c.l.b16 %v666
        %v777 = vunpack.c.h.b16 %v666
        %v778 = vunpack.c.l.b16 %v667
        %v779 = vunpack.c.h.b16 %v667
        %v780 = vunpack.c.l.b16 %v668
        %v781 = vunpack.c.h.b16 %v668
        %v782 = vunpack.c.l.b16 %v669
        %v783 = vunpack.c.h.b16 %v669
        %v784 = vunpack.c.l.b16 %v670
        %v785 = vunpack.c.h.b16 %v670
        %v786 = vunpack.c.l.b16 %v671
        %v787 = vunpack.c.h.b16 %v671
        %v788 = vunpack.c.l.b16 %v672
        %v789 = vunpack.c.h.b16 %v672
        %v790 = vpack.c.b16 %v730, %v726
        %v791 = vpack.c.b16 %v731, %v727
        %v792 = vpack.c.b16 %v732, %v728
        %v793 = vpack.c.b16 %v733, %v729
        %v794 = vpack.c.b16 %v738, %v734
        %v795 = vpack.c.b16 %v739, %v735
        %v796 = vpack.c.b16 %v740, %v736
        %v797 = vpack.c.b16 %v741, %v737
        %v798 = vpack.c.b16 %v746, %v742
        %v799 = vpack.c.b16 %v747, %v743
        %v800 = vpack.c.b16 %v748, %v744
        %v801 = vpack.c.b16 %v749, %v745
        %v802 = vpack.c.b16 %v754, %v750
        %v803 = vpack.c.b16 %v755, %v751
        %v804 = vpack.c.b16 %v756, %v752
        %v805 = vpack.c.b16 %v757, %v753
        %v806 = vpack.c.b16 %v762, %v758
        %v807 = vpack.c.b16 %v763, %v759
        %v808 = vpack.c.b16 %v764, %v760
        %v809 = vpack.c.b16 %v765, %v761
        %v810 = vpack.c.b16 %v770, %v766
        %v811 = vpack.c.b16 %v771, %v767
        %v812 = vpack.c.b16 %v772, %v768
        %v813 = vpack.c.b16 %v773, %v769
        %v814 = vpack.c.b16 %v778, %v774
        %v815 = vpack.c.b16 %v779, %v775
        %v816 = vpack.c.b16 %v780, %v776
        %v817 = vpack.c.b16 %v781, %v777
        %v818 = vpack.c.b16 %v786, %v782
        %v819 = vpack.c.b16 %v787, %v783
        %v820 = vpack.c.b16 %v788, %v784
        %v821 = vpack.c.b16 %v789, %v785
        %854 = vmatprep.subr.bf16.mxu0 %v819
        %855 = vmatpush1.bf16.msra.mxu0 %v818
        %856 = vmatprep.subr.bf16.mxu0 %v815
        %857 = vmatpush1.bf16.msra.mxu0 %v814
        %858 = vmatprep.subr.bf16.mxu0 %v811
        %859 = vmatpush1.bf16.msra.mxu0 %v810
        %860 = vmatprep.subr.bf16.mxu0 %v807
        %861 = vmatpush1.bf16.msra.mxu0 %v806
        %862 = vmatprep.subr.bf16.mxu0 %v803
        %863 = vmatpush1.bf16.msra.mxu0 %v802
        %864 = vmatprep.subr.bf16.mxu0 %v799
        %865 = vmatpush1.bf16.msra.mxu0 %v798
        %866 = vmatprep.subr.bf16.mxu0 %v795
        %867 = vmatpush1.bf16.msra.mxu0 %v794
        %868 = vmatprep.subr.bf16.mxu0 %v791
        %869 = vmatpush1.bf16.msra.mxu0 %v790
        %870 = vmatprep.subr.bf16.mxu0 0
        %871 = vmatpush2.bf16.msra.mxu0 0
        %872 = vmatprep.subr.bf16.mxu0 0
        %873 = vmatpush2.bf16.msra.mxu0 0
        %874 = vmatprep.subr.bf16.mxu0 0
        %875 = vmatpush2.bf16.msra.mxu0 0
        %876 = vmatprep.subr.bf16.mxu0 0
        %877 = vmatpush2.bf16.msra.mxu0 0
        %878 = vmatprep.subr.bf16.mxu0 0
        %879 = vmatpush2.bf16.msra.mxu0 0
        %880 = vmatprep.subr.bf16.mxu0 0
        %881 = vmatpush2.bf16.msra.mxu0 0
        %882 = vmatprep.subr.bf16.mxu0 0
        %883 = vmatpush2.bf16.msra.mxu0 0
        %884 = vmatprep.subr.bf16.mxu0 0
        %885 = vmatpush2.bf16.msra.mxu0 0
        %886 = vmatprep.mubr.bf16.mxu0 0
        %887 = vmatmul.mubr.bf16.gmra.mxu0 %v692
        %v888 = vpop.f32.mrf.mxu0
        %v889 = vadd.f32 0.0, %v888
        %v890 = vpop.f32.mrf.mxu0
        %v891 = vadd.f32 0.0, %v890
        %v892 = vpop.f32.mrf.mxu0
        %v893 = vadd.f32 0.0, %v892
        %v894 = vpop.f32.mrf.mxu0
        %v895 = vadd.f32 0.0, %v894
        %896 = vdwg.mxu0
        %897 = vmatprep.subr.bf16.mxu0 %v821
        %898 = vmatpush1.bf16.msra.mxu0 %v820
        %899 = vmatprep.subr.bf16.mxu0 %v817
        %900 = vmatpush1.bf16.msra.mxu0 %v816
        %901 = vmatprep.subr.bf16.mxu0 %v813
        %902 = vmatpush1.bf16.msra.mxu0 %v812
        %903 = vmatprep.subr.bf16.mxu0 %v809
        %904 = vmatpush1.bf16.msra.mxu0 %v808
        %905 = vmatprep.subr.bf16.mxu0 %v805
        %906 = vmatpush1.bf16.msra.mxu0 %v804
        %907 = vmatprep.subr.bf16.mxu0 %v801
        %908 = vmatpush1.bf16.msra.mxu0 %v800
        %909 = vmatprep.subr.bf16.mxu0 %v797
        %910 = vmatpush1.bf16.msra.mxu0 %v796
        %911 = vmatprep.subr.bf16.mxu0 %v793
        %912 = vmatpush1.bf16.msra.mxu0 %v792
        %913 = vmatprep.subr.bf16.mxu0 0
        %914 = vmatpush2.bf16.msra.mxu0 0
        %915 = vmatprep.subr.bf16.mxu0 0
        %916 = vmatpush2.bf16.msra.mxu0 0
        %917 = vmatprep.subr.bf16.mxu0 0
        %918 = vmatpush2.bf16.msra.mxu0 0
        %919 = vmatprep.subr.bf16.mxu0 0
        %920 = vmatpush2.bf16.msra.mxu0 0
        %921 = vmatprep.subr.bf16.mxu0 0
        %922 = vmatpush2.bf16.msra.mxu0 0
        %923 = vmatprep.subr.bf16.mxu0 0
        %924 = vmatpush2.bf16.msra.mxu0 0
        %925 = vmatprep.subr.bf16.mxu0 0
        %926 = vmatpush2.bf16.msra.mxu0 0
        %927 = vmatprep.subr.bf16.mxu0 0
        %928 = vmatpush2.bf16.msra.mxu0 0
        %929 = vmatprep.mubr.bf16.mxu0 0
        %930 = vmatmul.mubr.bf16.gmra.mxu0 %v692
        %v931 = vpop.f32.mrf.mxu0
        %v932 = vadd.f32 0.0, %v931
        %v933 = vpop.f32.mrf.mxu0
        %v934 = vadd.f32 0.0, %v933
        %v935 = vpop.f32.mrf.mxu0
        %v936 = vadd.f32 0.0, %v935
        %v937 = vpop.f32.mrf.mxu0
        %v938 = vadd.f32 0.0, %v937
        %939 = vdwg.mxu0
        %v973 = vunpack.c.l.b16 %v607
        %v974 = vunpack.c.h.b16 %v607
        %v975 = vunpack.c.l.b16 %v608
        %v976 = vunpack.c.h.b16 %v608
        %v977 = vunpack.c.l.b16 %v609
        %v978 = vunpack.c.h.b16 %v609
        %v979 = vunpack.c.l.b16 %v610
        %v980 = vunpack.c.h.b16 %v610
        %v981 = vunpack.c.l.b16 %v611
        %v982 = vunpack.c.h.b16 %v611
        %v983 = vunpack.c.l.b16 %v612
        %v984 = vunpack.c.h.b16 %v612
        %v985 = vunpack.c.l.b16 %v613
        %v986 = vunpack.c.h.b16 %v613
        %v987 = vunpack.c.l.b16 %v614
        %v988 = vunpack.c.h.b16 %v614
        %v989 = vunpack.c.l.b16 %v615
        %v990 = vunpack.c.h.b16 %v615
        %v991 = vunpack.c.l.b16 %v616
        %v992 = vunpack.c.h.b16 %v616
        %v993 = vunpack.c.l.b16 %v617
        %v994 = vunpack.c.h.b16 %v617
        %v995 = vunpack.c.l.b16 %v618
        %v996 = vunpack.c.h.b16 %v618
        %v997 = vunpack.c.l.b16 %v619
        %v998 = vunpack.c.h.b16 %v619
        %v999 = vunpack.c.l.b16 %v620
        %v1000 = vunpack.c.h.b16 %v620
        %v1001 = vunpack.c.l.b16 %v621
        %v1002 = vunpack.c.h.b16 %v621
        %v1003 = vunpack.c.l.b16 %v622
        %v1004 = vunpack.c.h.b16 %v622
        %v1005 = vunpack.c.l.b16 %v623
        %v1006 = vunpack.c.h.b16 %v623
        %v1007 = vunpack.c.l.b16 %v624
        %v1008 = vunpack.c.h.b16 %v624
        %v1009 = vunpack.c.l.b16 %v625
        %v1010 = vunpack.c.h.b16 %v625
        %v1011 = vunpack.c.l.b16 %v626
        %v1012 = vunpack.c.h.b16 %v626
        %v1013 = vunpack.c.l.b16 %v627
        %v1014 = vunpack.c.h.b16 %v627
        %v1015 = vunpack.c.l.b16 %v628
        %v1016 = vunpack.c.h.b16 %v628
        %v1017 = vunpack.c.l.b16 %v629
        %v1018 = vunpack.c.h.b16 %v629
        %v1019 = vunpack.c.l.b16 %v630
        %v1020 = vunpack.c.h.b16 %v630
        %v1021 = vunpack.c.l.b16 %v631
        %v1022 = vunpack.c.h.b16 %v631
        %v1023 = vunpack.c.l.b16 %v632
        %v1024 = vunpack.c.h.b16 %v632
        %v1025 = vunpack.c.l.b16 %v633
        %v1026 = vunpack.c.h.b16 %v633
        %v1027 = vunpack.c.l.b16 %v634
        %v1028 = vunpack.c.h.b16 %v634
        %v1029 = vunpack.c.l.b16 %v635
        %v1030 = vunpack.c.h.b16 %v635
        %v1031 = vunpack.c.l.b16 %v636
        %v1032 = vunpack.c.h.b16 %v636
        %v1033 = vunpack.c.l.b16 %v637
        %v1034 = vunpack.c.h.b16 %v637
        %v1035 = vunpack.c.l.b16 %v638
        %v1036 = vunpack.c.h.b16 %v638
        %v1037 = vpack.c.b16 %v977, %v973
        %v1038 = vpack.c.b16 %v978, %v974
        %v1039 = vpack.c.b16 %v979, %v975
        %v1040 = vpack.c.b16 %v980, %v976
        %v1041 = vpack.c.b16 %v985, %v981
        %v1042 = vpack.c.b16 %v986, %v982
        %v1043 = vpack.c.b16 %v987, %v983
        %v1044 = vpack.c.b16 %v988, %v984
        %v1045 = vpack.c.b16 %v993, %v989
        %v1046 = vpack.c.b16 %v994, %v990
        %v1047 = vpack.c.b16 %v995, %v991
        %v1048 = vpack.c.b16 %v996, %v992
        %v1049 = vpack.c.b16 %v1001, %v997
        %v1050 = vpack.c.b16 %v1002, %v998
        %v1051 = vpack.c.b16 %v1003, %v999
        %v1052 = vpack.c.b16 %v1004, %v1000
        %v1053 = vpack.c.b16 %v1009, %v1005
        %v1054 = vpack.c.b16 %v1010, %v1006
        %v1055 = vpack.c.b16 %v1011, %v1007
        %v1056 = vpack.c.b16 %v1012, %v1008
        %v1057 = vpack.c.b16 %v1017, %v1013
        %v1058 = vpack.c.b16 %v1018, %v1014
        %v1059 = vpack.c.b16 %v1019, %v1015
        %v1060 = vpack.c.b16 %v1020, %v1016
        %v1061 = vpack.c.b16 %v1025, %v1021
        %v1062 = vpack.c.b16 %v1026, %v1022
        %v1063 = vpack.c.b16 %v1027, %v1023
        %v1064 = vpack.c.b16 %v1028, %v1024
        %v1065 = vpack.c.b16 %v1033, %v1029
        %v1066 = vpack.c.b16 %v1034, %v1030
        %v1067 = vpack.c.b16 %v1035, %v1031
        %v1068 = vpack.c.b16 %v1036, %v1032
        %1101 = vmatprep.subr.bf16.mxu0 %v1066
        %1102 = vmatpush1.bf16.msra.mxu0 %v1065
        %1103 = vmatprep.subr.bf16.mxu0 %v1062
        %1104 = vmatpush1.bf16.msra.mxu0 %v1061
        %1105 = vmatprep.subr.bf16.mxu0 %v1058
        %1106 = vmatpush1.bf16.msra.mxu0 %v1057
        %1107 = vmatprep.subr.bf16.mxu0 %v1054
        %1108 = vmatpush1.bf16.msra.mxu0 %v1053
        %1109 = vmatprep.subr.bf16.mxu0 %v1050
        %1110 = vmatpush1.bf16.msra.mxu0 %v1049
        %1111 = vmatprep.subr.bf16.mxu0 %v1046
        %1112 = vmatpush1.bf16.msra.mxu0 %v1045
        %1113 = vmatprep.subr.bf16.mxu0 %v1042
        %1114 = vmatpush1.bf16.msra.mxu0 %v1041
        %1115 = vmatprep.subr.bf16.mxu0 %v1038
        %1116 = vmatpush1.bf16.msra.mxu0 %v1037
        %1117 = vmatprep.subr.bf16.mxu0 0
        %1118 = vmatpush2.bf16.msra.mxu0 0
        %1119 = vmatprep.subr.bf16.mxu0 0
        %1120 = vmatpush2.bf16.msra.mxu0 0
        %1121 = vmatprep.subr.bf16.mxu0 0
        %1122 = vmatpush2.bf16.msra.mxu0 0
        %1123 = vmatprep.subr.bf16.mxu0 0
        %1124 = vmatpush2.bf16.msra.mxu0 0
        %1125 = vmatprep.subr.bf16.mxu0 0
        %1126 = vmatpush2.bf16.msra.mxu0 0
        %1127 = vmatprep.subr.bf16.mxu0 0
        %1128 = vmatpush2.bf16.msra.mxu0 0
        %1129 = vmatprep.subr.bf16.mxu0 0
        %1130 = vmatpush2.bf16.msra.mxu0 0
        %1131 = vmatprep.subr.bf16.mxu0 0
        %1132 = vmatpush2.bf16.msra.mxu0 0
        %1133 = vmatprep.mubr.bf16.mxu0 0
        %1134 = vmatmul.mubr.bf16.gmra.mxu0 %v679
        %v1135 = vpop.f32.mrf.mxu0
        %v1136 = vadd.f32 %v889, %v1135
        %v1137 = vpop.f32.mrf.mxu0
        %v1138 = vadd.f32 %v891, %v1137
        %v1139 = vpop.f32.mrf.mxu0
        %v1140 = vadd.f32 %v893, %v1139
        %v1141 = vpop.f32.mrf.mxu0
        %v1142 = vadd.f32 %v895, %v1141
        %1143 = vdwg.mxu0
        %1144 = vmatprep.subr.bf16.mxu0 %v1068
        %1145 = vmatpush1.bf16.msra.mxu0 %v1067
        %1146 = vmatprep.subr.bf16.mxu0 %v1064
        %1147 = vmatpush1.bf16.msra.mxu0 %v1063
        %1148 = vmatprep.subr.bf16.mxu0 %v1060
        %1149 = vmatpush1.bf16.msra.mxu0 %v1059
        %1150 = vmatprep.subr.bf16.mxu0 %v1056
        %1151 = vmatpush1.bf16.msra.mxu0 %v1055
        %1152 = vmatprep.subr.bf16.mxu0 %v1052
        %1153 = vmatpush1.bf16.msra.mxu0 %v1051
        %1154 = vmatprep.subr.bf16.mxu0 %v1048
        %1155 = vmatpush1.bf16.msra.mxu0 %v1047
        %1156 = vmatprep.subr.bf16.mxu0 %v1044
        %1157 = vmatpush1.bf16.msra.mxu0 %v1043
        %1158 = vmatprep.subr.bf16.mxu0 %v1040
        %1159 = vmatpush1.bf16.msra.mxu0 %v1039
        %1160 = vmatprep.subr.bf16.mxu0 0
        %1161 = vmatpush2.bf16.msra.mxu0 0
        %1162 = vmatprep.subr.bf16.mxu0 0
        %1163 = vmatpush2.bf16.msra.mxu0 0
        %1164 = vmatprep.subr.bf16.mxu0 0
        %1165 = vmatpush2.bf16.msra.mxu0 0
        %1166 = vmatprep.subr.bf16.mxu0 0
        %1167 = vmatpush2.bf16.msra.mxu0 0
        %1168 = vmatprep.subr.bf16.mxu0 0
        %1169 = vmatpush2.bf16.msra.mxu0 0
        %1170 = vmatprep.subr.bf16.mxu0 0
        %1171 = vmatpush2.bf16.msra.mxu0 0
        %1172 = vmatprep.subr.bf16.mxu0 0
        %1173 = vmatpush2.bf16.msra.mxu0 0
        %1174 = vmatprep.subr.bf16.mxu0 0
        %1175 = vmatpush2.bf16.msra.mxu0 0
        %1176 = vmatprep.mubr.bf16.mxu0 0
        %1177 = vmatmul.mubr.bf16.gmra.mxu0 %v679
        %v1178 = vpop.f32.mrf.mxu0
        %v1179 = vadd.f32 %v932, %v1178
        %v1180 = vpop.f32.mrf.mxu0
        %v1181 = vadd.f32 %v934, %v1180
        %v1182 = vpop.f32.mrf.mxu0
        %v1183 = vadd.f32 %v936, %v1182
        %v1184 = vpop.f32.mrf.mxu0
        %v1185 = vadd.f32 %v938, %v1184
        %1186 = vdwg.mxu0
        %v1187 = vld [vmem:[#allocation3] sm:$0xe]
        %s1188 = scalar_lea.vmem [#allocation4], 512
        %v1189 = vld [vmem:[%s1188] sm:$0xff]
        %v1190 = vld [vmem:[%s1188 + $0x8] sm:$0xff]
        %v1191 = vld [vmem:[%s1188 + $0x10] sm:$0xff]
        %v1192 = vld [vmem:[%s1188 + $0x18] sm:$0xff]
        %v1193 = vld [vmem:[%s1188 + $0x20] sm:$0xff]
        %v1194 = vld [vmem:[%s1188 + $0x28] sm:$0xff]
        %v1195 = vld [vmem:[%s1188 + $0x30] sm:$0xff]
        %v1196 = vld [vmem:[%s1188 + $0x38] sm:$0xff]
        %v1197 = vld [vmem:[%s1188 + $0x40] sm:$0xff]
        %v1198 = vld [vmem:[%s1188 + $0x48] sm:$0xff]
        %v1199 = vld [vmem:[%s1188 + $0x50] sm:$0xff]
        %v1200 = vld [vmem:[%s1188 + $0x58] sm:$0xff]
        %v1201 = vld [vmem:[%s1188 + $0x60] sm:$0xff]
        %v1202 = vld [vmem:[%s1188 + $0x68] sm:$0xff]
        %v1203 = vld [vmem:[%s1188 + $0x70] sm:$0xff]
        %v1204 = vld [vmem:[%s1188 + $0x78] sm:$0xff]
        %v1205 = vld [vmem:[%s1188 + $0x80] sm:$0xff]
        %v1206 = vld [vmem:[%s1188 + $0x88] sm:$0xff]
        %v1207 = vld [vmem:[%s1188 + $0x90] sm:$0xff]
        %v1208 = vld [vmem:[%s1188 + $0x98] sm:$0xff]
        %v1209 = vld [vmem:[%s1188 + $0xa0] sm:$0xff]
        %v1210 = vld [vmem:[%s1188 + $0xa8] sm:$0xff]
        %v1211 = vld [vmem:[%s1188 + $0xb0] sm:$0xff]
        %v1212 = vld [vmem:[%s1188 + $0xb8] sm:$0xff]
        %v1213 = vld [vmem:[%s1188 + $0xc0] sm:$0xff]
        %v1214 = vld [vmem:[%s1188 + $0xc8] sm:$0xff]
        %v1215 = vld [vmem:[%s1188 + $0xd0] sm:$0xff]
        %v1216 = vld [vmem:[%s1188 + $0xd8] sm:$0xff]
        %v1217 = vld [vmem:[%s1188 + $0xe0] sm:$0xff]
        %v1218 = vld [vmem:[%s1188 + $0xe8] sm:$0xff]
        %v1219 = vld [vmem:[%s1188 + $0xf0] sm:$0xff]
        %v1220 = vld [vmem:[%s1188 + $0xf8] sm:$0xff]
        %v1222 = vunpack.c.l.b16 %v1187
        %v1223 = vpack.c.b16 %v677, %v1222
        %v1224 = vrot.slane %v1223, 1
        %v1225 = vrot.slane %v680, 1
        %v1226 = vsel %vm485, %v1224, %v1225
        %v1260 = vunpack.c.l.b16 %v1189
        %v1261 = vunpack.c.h.b16 %v1189
        %v1262 = vunpack.c.l.b16 %v1190
        %v1263 = vunpack.c.h.b16 %v1190
        %v1264 = vunpack.c.l.b16 %v1191
        %v1265 = vunpack.c.h.b16 %v1191
        %v1266 = vunpack.c.l.b16 %v1192
        %v1267 = vunpack.c.h.b16 %v1192
        %v1268 = vunpack.c.l.b16 %v1193
        %v1269 = vunpack.c.h.b16 %v1193
        %v1270 = vunpack.c.l.b16 %v1194
        %v1271 = vunpack.c.h.b16 %v1194
        %v1272 = vunpack.c.l.b16 %v1195
        %v1273 = vunpack.c.h.b16 %v1195
        %v1274 = vunpack.c.l.b16 %v1196
        %v1275 = vunpack.c.h.b16 %v1196
        %v1276 = vunpack.c.l.b16 %v1197
        %v1277 = vunpack.c.h.b16 %v1197
        %v1278 = vunpack.c.l.b16 %v1198
        %v1279 = vunpack.c.h.b16 %v1198
        %v1280 = vunpack.c.l.b16 %v1199
        %v1281 = vunpack.c.h.b16 %v1199
        %v1282 = vunpack.c.l.b16 %v1200
        %v1283 = vunpack.c.h.b16 %v1200
        %v1284 = vunpack.c.l.b16 %v1201
        %v1285 = vunpack.c.h.b16 %v1201
        %v1286 = vunpack.c.l.b16 %v1202
        %v1287 = vunpack.c.h.b16 %v1202
        %v1288 = vunpack.c.l.b16 %v1203
        %v1289 = vunpack.c.h.b16 %v1203
        %v1290 = vunpack.c.l.b16 %v1204
        %v1291 = vunpack.c.h.b16 %v1204
        %v1292 = vunpack.c.l.b16 %v1205
        %v1293 = vunpack.c.h.b16 %v1205
        %v1294 = vunpack.c.l.b16 %v1206
        %v1295 = vunpack.c.h.b16 %v1206
        %v1296 = vunpack.c.l.b16 %v1207
        %v1297 = vunpack.c.h.b16 %v1207
        %v1298 = vunpack.c.l.b16 %v1208
        %v1299 = vunpack.c.h.b16 %v1208
        %v1300 = vunpack.c.l.b16 %v1209
        %v1301 = vunpack.c.h.b16 %v1209
        %v1302 = vunpack.c.l.b16 %v1210
        %v1303 = vunpack.c.h.b16 %v1210
        %v1304 = vunpack.c.l.b16 %v1211
        %v1305 = vunpack.c.h.b16 %v1211
        %v1306 = vunpack.c.l.b16 %v1212
        %v1307 = vunpack.c.h.b16 %v1212
        %v1308 = vunpack.c.l.b16 %v1213
        %v1309 = vunpack.c.h.b16 %v1213
        %v1310 = vunpack.c.l.b16 %v1214
        %v1311 = vunpack.c.h.b16 %v1214
        %v1312 = vunpack.c.l.b16 %v1215
        %v1313 = vunpack.c.h.b16 %v1215
        %v1314 = vunpack.c.l.b16 %v1216
        %v1315 = vunpack.c.h.b16 %v1216
        %v1316 = vunpack.c.l.b16 %v1217
        %v1317 = vunpack.c.h.b16 %v1217
        %v1318 = vunpack.c.l.b16 %v1218
        %v1319 = vunpack.c.h.b16 %v1218
        %v1320 = vunpack.c.l.b16 %v1219
        %v1321 = vunpack.c.h.b16 %v1219
        %v1322 = vunpack.c.l.b16 %v1220
        %v1323 = vunpack.c.h.b16 %v1220
        %v1324 = vpack.c.b16 %v1264, %v1260
        %v1325 = vpack.c.b16 %v1265, %v1261
        %v1326 = vpack.c.b16 %v1266, %v1262
        %v1327 = vpack.c.b16 %v1267, %v1263
        %v1328 = vpack.c.b16 %v1272, %v1268
        %v1329 = vpack.c.b16 %v1273, %v1269
        %v1330 = vpack.c.b16 %v1274, %v1270
        %v1331 = vpack.c.b16 %v1275, %v1271
        %v1332 = vpack.c.b16 %v1280, %v1276
        %v1333 = vpack.c.b16 %v1281, %v1277
        %v1334 = vpack.c.b16 %v1282, %v1278
        %v1335 = vpack.c.b16 %v1283, %v1279
        %v1336 = vpack.c.b16 %v1288, %v1284
        %v1337 = vpack.c.b16 %v1289, %v1285
        %v1338 = vpack.c.b16 %v1290, %v1286
        %v1339 = vpack.c.b16 %v1291, %v1287
        %v1340 = vpack.c.b16 %v1296, %v1292
        %v1341 = vpack.c.b16 %v1297, %v1293
        %v1342 = vpack.c.b16 %v1298, %v1294
        %v1343 = vpack.c.b16 %v1299, %v1295
        %v1344 = vpack.c.b16 %v1304, %v1300
        %v1345 = vpack.c.b16 %v1305, %v1301
        %v1346 = vpack.c.b16 %v1306, %v1302
        %v1347 = vpack.c.b16 %v1307, %v1303
        %v1348 = vpack.c.b16 %v1312, %v1308
        %v1349 = vpack.c.b16 %v1313, %v1309
        %v1350 = vpack.c.b16 %v1314, %v1310
        %v1351 = vpack.c.b16 %v1315, %v1311
        %v1352 = vpack.c.b16 %v1320, %v1316
        %v1353 = vpack.c.b16 %v1321, %v1317
        %v1354 = vpack.c.b16 %v1322, %v1318
        %v1355 = vpack.c.b16 %v1323, %v1319
        %1388 = vmatprep.subr.bf16.mxu0 %v1353
        %1389 = vmatpush1.bf16.msra.mxu0 %v1352
        %1390 = vmatprep.subr.bf16.mxu0 %v1349
        %1391 = vmatpush1.bf16.msra.mxu0 %v1348
        %1392 = vmatprep.subr.bf16.mxu0 %v1345
        %1393 = vmatpush1.bf16.msra.mxu0 %v1344
        %1394 = vmatprep.subr.bf16.mxu0 %v1341
        %1395 = vmatpush1.bf16.msra.mxu0 %v1340
        %1396 = vmatprep.subr.bf16.mxu0 %v1337
        %1397 = vmatpush1.bf16.msra.mxu0 %v1336
        %1398 = vmatprep.subr.bf16.mxu0 %v1333
        %1399 = vmatpush1.bf16.msra.mxu0 %v1332
        %1400 = vmatprep.subr.bf16.mxu0 %v1329
        %1401 = vmatpush1.bf16.msra.mxu0 %v1328
        %1402 = vmatprep.subr.bf16.mxu0 %v1325
        %1403 = vmatpush1.bf16.msra.mxu0 %v1324
        %1404 = vmatprep.subr.bf16.mxu0 0
        %1405 = vmatpush2.bf16.msra.mxu0 0
        %1406 = vmatprep.subr.bf16.mxu0 0
        %1407 = vmatpush2.bf16.msra.mxu0 0
        %1408 = vmatprep.subr.bf16.mxu0 0
        %1409 = vmatpush2.bf16.msra.mxu0 0
        %1410 = vmatprep.subr.bf16.mxu0 0
        %1411 = vmatpush2.bf16.msra.mxu0 0
        %1412 = vmatprep.subr.bf16.mxu0 0
        %1413 = vmatpush2.bf16.msra.mxu0 0
        %1414 = vmatprep.subr.bf16.mxu0 0
        %1415 = vmatpush2.bf16.msra.mxu0 0
        %1416 = vmatprep.subr.bf16.mxu0 0
        %1417 = vmatpush2.bf16.msra.mxu0 0
        %1418 = vmatprep.subr.bf16.mxu0 0
        %1419 = vmatpush2.bf16.msra.mxu0 0
        %1420 = vmatprep.mubr.bf16.mxu0 0
        %1421 = vmatmul.mubr.bf16.gmra.mxu0 %v1226
        %v1422 = vpop.f32.mrf.mxu0
        %v1423 = vadd.f32 0.0, %v1422
        %v1424 = vpop.f32.mrf.mxu0
        %v1425 = vadd.f32 0.0, %v1424
        %v1426 = vpop.f32.mrf.mxu0
        %v1427 = vadd.f32 0.0, %v1426
        %v1428 = vpop.f32.mrf.mxu0
        %v1429 = vadd.f32 0.0, %v1428
        %1430 = vdwg.mxu0
        %1431 = vmatprep.subr.bf16.mxu0 %v1355
        %1432 = vmatpush1.bf16.msra.mxu0 %v1354
        %1433 = vmatprep.subr.bf16.mxu0 %v1351
        %1434 = vmatpush1.bf16.msra.mxu0 %v1350
        %1435 = vmatprep.subr.bf16.mxu0 %v1347
        %1436 = vmatpush1.bf16.msra.mxu0 %v1346
        %1437 = vmatprep.subr.bf16.mxu0 %v1343
        %1438 = vmatpush1.bf16.msra.mxu0 %v1342
        %1439 = vmatprep.subr.bf16.mxu0 %v1339
        %1440 = vmatpush1.bf16.msra.mxu0 %v1338
        %1441 = vmatprep.subr.bf16.mxu0 %v1335
        %1442 = vmatpush1.bf16.msra.mxu0 %v1334
        %1443 = vmatprep.subr.bf16.mxu0 %v1331
        %1444 = vmatpush1.bf16.msra.mxu0 %v1330
        %1445 = vmatprep.subr.bf16.mxu0 %v1327
        %1446 = vmatpush1.bf16.msra.mxu0 %v1326
        %1447 = vmatprep.subr.bf16.mxu0 0
        %1448 = vmatpush2.bf16.msra.mxu0 0
        %1449 = vmatprep.subr.bf16.mxu0 0
        %1450 = vmatpush2.bf16.msra.mxu0 0
        %1451 = vmatprep.subr.bf16.mxu0 0
        %1452 = vmatpush2.bf16.msra.mxu0 0
        %1453 = vmatprep.subr.bf16.mxu0 0
        %1454 = vmatpush2.bf16.msra.mxu0 0
        %1455 = vmatprep.subr.bf16.mxu0 0
        %1456 = vmatpush2.bf16.msra.mxu0 0
        %1457 = vmatprep.subr.bf16.mxu0 0
        %1458 = vmatpush2.bf16.msra.mxu0 0
        %1459 = vmatprep.subr.bf16.mxu0 0
        %1460 = vmatpush2.bf16.msra.mxu0 0
        %1461 = vmatprep.subr.bf16.mxu0 0
        %1462 = vmatpush2.bf16.msra.mxu0 0
        %1463 = vmatprep.mubr.bf16.mxu0 0
        %1464 = vmatmul.mubr.bf16.gmra.mxu0 %v1226
        %v1465 = vpop.f32.mrf.mxu0
        %v1466 = vadd.f32 0.0, %v1465
        %v1467 = vpop.f32.mrf.mxu0
        %v1468 = vadd.f32 0.0, %v1467
        %v1469 = vpop.f32.mrf.mxu0
        %v1470 = vadd.f32 0.0, %v1469
        %v1471 = vpop.f32.mrf.mxu0
        %v1472 = vadd.f32 0.0, %v1471
        %1473 = vdwg.mxu0
        %v1474 = vadd.f32 %v1136, %v1423
        %v1475 = vadd.f32 %v1138, %v1425
        %v1476 = vadd.f32 %v1179, %v1466
        %v1477 = vadd.f32 %v1181, %v1468
        %v1478 = vadd.f32 %v1140, %v1427
        %v1479 = vadd.f32 %v1142, %v1429
        %v1480 = vadd.f32 %v1183, %v1470
        %v1481 = vadd.f32 %v1185, %v1472
        %v1482 = vld [vmem:[%s4] sm:$0xf]
        %v1484 = vlaneseq
        %v1485 = vshrl.u32 %v1484, 7
        %v1486 = vsub.s32 0, %v1485
        %v1487 = vrot.slane %v1482, %v1486
        %v1488 = vlaneseq
        %v1489 = vshrl.u32 %v1488, 7
        %v1490 = vsub.s32 1, %v1489
        %v1491 = vrot.slane %v1482, %v1490
        %v1492 = vlaneseq
        %v1493 = vshrl.u32 %v1492, 7
        %v1494 = vsub.s32 2, %v1493
        %v1495 = vrot.slane %v1482, %v1494
        %v1496 = vlaneseq
        %v1497 = vshrl.u32 %v1496, 7
        %v1498 = vsub.s32 3, %v1497
        %v1499 = vrot.slane %v1482, %v1498
        %v1504 = vadd.f32 %v1474, %v1487
        %v1505 = vadd.f32 %v1475, %v1491
        %v1506 = vadd.f32 %v1476, %v1495
        %v1507 = vadd.f32 %v1477, %v1499
        %v1508 = vadd.f32 %v1478, %v1487
        %v1509 = vadd.f32 %v1479, %v1491
        %v1510 = vadd.f32 %v1480, %v1495
        %v1511 = vadd.f32 %v1481, %v1499
        %v1512 = vmax.f32 %v1504, 0.0
        %v1513 = vmax.f32 %v1505, 0.0
        %v1514 = vmax.f32 %v1506, 0.0
        %v1515 = vmax.f32 %v1507, 0.0
        %v1516 = vmax.f32 %v1508, 0.0
        %v1517 = vmax.f32 %v1509, 0.0
        %v1518 = vmax.f32 %v1510, 0.0
        %v1519 = vmax.f32 %v1511, 0.0
        %1520 = vst [vmem:[%s239] sm:$0xff] %v1512
        %1521 = vst [vmem:[%s239 + $0x8] sm:$0xff] %v1513
        %1522 = vst [vmem:[%s239 + $0x10] sm:$0xff] %v1514
        %1523 = vst [vmem:[%s239 + $0x18] sm:$0xff] %v1515
        %1524 = vst [vmem:[%s239 + $0x20] sm:$0xff] %v1516
        %1525 = vst [vmem:[%s239 + $0x28] sm:$0xff] %v1517
        %1526 = vst [vmem:[%s239 + $0x30] sm:$0xff] %v1518
        %1527 = vst [vmem:[%s239 + $0x38] sm:$0xff] %v1519
        %p1528 = scmp.lt.s32.totalorder %s17, 1
        %s1529 = scalar_select %p1528, %s17, 1
        %s1530 = smul.addr %s1529, 8
        %s1531 = smul.addr %s1530, 8
        %s1532 = scalar_lea.vmem %s5, %s1531
        // Predicated region
        $region45: #{decoder_block_v2_forward.1} parent=39 // pred_check
          %p1533 = pneg %p145
        $region46: #{decoder_block_v2_forward.1} parent=39 // pred_check_branch
          %1535 = sbr.rel (%p1533) target = $region48
        $region47: #{decoder_block_v2_forward.1} parent=39 // pred_region
          _
        $region48: #{decoder_block_v2_forward.1} parent=39 // pred_fallthru
          _
      $region40: #{decoder_block_v2_forward.1} parent=5 // pred_fallthru
        _
      %p1536 = scmp.le.s32.totalorder 2, %s12
      // Predicated region
      $region49: #{decoder_block_v2_forward.1} parent=5 // pred_check
        %p1537 = pneg %p1536
      $region50: #{decoder_block_v2_forward.1} parent=5 // pred_check_branch
        %1539 = sbr.rel (%p1537) target = $region52
      $region51: #{decoder_block_v2_forward.1} parent=5 // pred_region
        %s1540 = ssub.s32 %s12, 2
        // Predicated region
        $region53: #{decoder_block_v2_forward.1} parent=51 // pred_check
          %p1541 = pneg %p151
        $region54: #{decoder_block_v2_forward.1} parent=51 // pred_check_branch
          %1543 = sbr.rel (%p1541) target = $region56
        $region55: #{decoder_block_v2_forward.1} parent=51 // pred_region
          %p1544 = scmp.lt.s32.totalorder %s18, 1
          %s1545 = scalar_select %p1544, %s18, 1
          %s1546 = smul.addr %s1545, 8
          %s1547 = smul.addr %s1546, 8
          %s1548 = scalar_lea.vmem %s5, %s1547
        $region56: #{decoder_block_v2_forward.1} parent=51 // pred_fallthru
          _
      $region52: #{decoder_block_v2_forward.1} parent=5 // pred_fallthru
        _
    $region6: #{decoder_block_v2_forward.1} parent=1 // loop_footer
      %s16 = sadd.s32 1, %s12
    $region7: #{decoder_block_v2_forward.1} parent=1 // loop_footer_branch
      %11 = sbr.rel target = $region3
    $region8: #{decoder_block_v2_forward.1} parent=1 // loop_exit
      _
    %1549 = vsyncpa [#allocation5], 1
    %s1550 = scalar_lea.sflag [#allocation5], 1
    %1551 = vsyncpa %s1550, 1

</llo_original>
